<compile_context>
chip_gen: v6e
topology: v6e:2x2x1
jax: 0.10.0
libtpu: 0.0.40
codegen_flags: <defaults>
</compile_context>

<pallas_src>
import jax
import jax.numpy as jnp
from jax.experimental import pallas as pl
from jax.experimental.pallas import tpu as pltpu


def _round_up(v, m):
    return (v + m - 1) // m * m


def _gat_edge_kernel(w_ref, hexp_ref, dmask_ref, m_ref, sb_ref,      # resident inputs
                     src_ref, trg_ref, trgr_ref,                     # per-edge-block inputs
                     out_ref):                                        # resident output/accumulator
    f32 = jnp.float32
    bf16 = jnp.bfloat16
    npad, hfp = sb_ref.shape
    num_heads = hexp_ref.shape[0]
    eb = src_ref.shape[0]

    def expand_heads(v):
        # (rows, H) -> (rows, hfp) using the hoisted per-head lane-mask rows of hexp
        # (col h gets v[:,h]; feature cols of head h get v[:,h]; padding cols stay 0).
        hexp = hexp_ref[...]
        terms = [v[:, h:h + 1] * hexp[h:h + 1, :] for h in range(num_heads)]
        while len(terms) > 1:                      # tree add (short dependency chain)
            nxt = [terms[i] + terms[i + 1] for i in range(0, len(terms) - 1, 2)]
            if len(terms) % 2:
                nxt.append(terms[-1])
            terms = nxt
        return terms[0]

    @pl.when(pl.program_id(0) == 0)
    def _init():
        out_ref[...] = jnp.zeros_like(out_ref)

    # ---- build gather / scatter selection matrices for this edge block (bf16, exact 0/1)
    lane2n = jax.lax.broadcasted_iota(jnp.int32, (eb, 2 * npad), 1)
    combo = jnp.logical_or(lane2n == src_ref[...],
                           lane2n == (trg_ref[...] + npad)).astype(bf16)   # (EB, 2*Npad)
    sub_n = jax.lax.broadcasted_iota(jnp.int32, (npad, eb), 0)
    scat = (sub_n == trgr_ref[...]).astype(bf16)                           # (Npad, EB)

    # ---- single wide gather: cols [0,H) = ss[src]+st[trg]; cols [H,H+HF) = proj[src]
    gath = jnp.dot(combo, w_ref[...], preferred_element_type=f32)          # (EB, hfp) f32
    raw = gath[:, 0:num_heads]                                             # (EB, H)
    e = jnp.where(raw > 0.0, raw, 0.2 * raw)                               # LeakyReLU(0.2)
    # per-head exact max subtracted -> e - m <= 0 for real edges (min() only guards padding)
    p = jnp.exp(jnp.minimum(e - m_ref[...], 0.0))                          # (EB, H)

    att = expand_heads(p)                      # exp(e) per head in feature cols AND cols [0,H)
    base = jnp.where(dmask_ref[...] != 0.0, 1.0, gath)   # den cols -> 1, feature cols -> proj
    weighted = (att * base).astype(bf16)                                   # (EB, hfp)

    # ---- fused scatter: numerator (feature cols) + denominator (cols [0,H)) in one matmul
    out_ref[...] += jnp.dot(scat, weighted, preferred_element_type=f32)    # (Npad, hfp)

    @pl.when(pl.program_id(0) == pl.num_programs(0) - 1)
    def _fin():
        acc = out_ref[...]
        inv = pl.reciprocal(acc[:, 0:num_heads] + 1e-16)                   # (Npad, H), exact
        o = acc * expand_heads(inv) + sb_ref[...]                          # softmax + skip + bias
        o = jnp.where(o > 0.0, o, jnp.exp(jnp.minimum(o, 0.0)) - 1.0)      # ELU
        out_ref[...] = o.astype(out_ref.dtype)


def gat_layer_imp3_forward(x, edge_index, params, num_heads, num_out_features,
                           *, edge_block=256):
    """Pallas implementation of GATLayerImp3.forward (eval mode, concat=True)."""
    f32 = jnp.float32
    n, f_in = x.shape
    hf = num_heads * num_out_features
    hfp = _round_up(num_heads + hf, 128)        # lane-dense width: [den | features | pad]
    npad = _round_up(n, 64)                     # 2*npad multiple of 128 for the gather contraction
    e_cnt = edge_index.shape[1]
    epad = _round_up(max(e_cnt, 1), edge_block)
    num_blocks = epad // edge_block

    # ---- node-level projections / scores in plain XLA (hoisted out of the kernel) ----
    x32 = x.astype(f32)
    proj = x32 @ params["w"].astype(f32)                                   # (N, HF)
    proj_r = proj.reshape(n, num_heads, num_out_features)
    ss = jnp.sum(proj_r * params["a_src"].astype(f32)[None], axis=-1)      # (N, H)
    st = jnp.sum(proj_r * params["a_trg"].astype(f32)[None], axis=-1)      # (N, H)
    if num_out_features == f_in:
        skip = jnp.tile(x32, (1, num_heads))                               # identity skip per head
    else:
        skip = x32 @ params["w_skip"].astype(f32)
    sb = skip + params["bias"].astype(f32)[None, :]                        # skip + bias, (N, HF)

    src = edge_index[0].astype(jnp.int32)
    trg = edge_index[1].astype(jnp.int32)

    # exact per-head softmax stabilizer (same output as torch's global-max subtraction)
    if e_cnt > 0:
        raw_e = ss[src] + st[trg]
        lk = jnp.where(raw_e > 0.0, raw_e, 0.2 * raw_e)
        m = jnp.max(lk, axis=0)
    else:
        m = jnp.zeros((num_heads,), f32)
    m2 = m.reshape(1, num_heads)

    # combined gather weights: top half = [ss | proj], bottom half = [st | 0]
    combo_w = jnp.zeros((2 * npad, hfp), f32)
    combo_w = combo_w.at[:n, 0:num_heads].set(ss)
    combo_w = combo_w.at[:n, num_heads:num_heads + hf].set(proj)
    combo_w = combo_w.at[npad:npad + n, 0:num_heads].set(st)
    combo_w = combo_w.astype(jnp.bfloat16)

    sb_p = jnp.zeros((npad, hfp), f32).at[:n, num_heads:num_heads + hf].set(sb)

    # head-expansion lane masks (den col h + feature cols of head h) and den-column mask
    hexp = jnp.zeros((num_heads, hfp), f32)
    for h in range(num_heads):
        hexp = hexp.at[h, h].set(1.0)
        lo = num_heads + h * num_out_features
        hexp = hexp.at[h, lo:lo + num_out_features].set(1.0)
    dmask = jnp.zeros((1, hfp), f32).at[0, 0:num_heads].set(1.0)

    # edge ids, padded with an id that matches neither one-hot half -> padded edges are inert
    pad_id = 2 * npad
    src_p = jnp.full((epad,), pad_id, dtype=jnp.int32).at[:e_cnt].set(src)
    trg_p = jnp.full((epad,), pad_id, dtype=jnp.int32).at[:e_cnt].set(trg)
    src_col = src_p.reshape(epad, 1)
    trg_col = trg_p.reshape(epad, 1)
    trg_row = trg_p.reshape(1, epad)

    grid_spec = pltpu.PrefetchScalarGridSpec(
        num_scalar_prefetch=0,
        grid=(num_blocks,),
        in_specs=[
            pl.BlockSpec((2 * npad, hfp), lambda i: (0, 0)),       # combined gather weights (bf16)
            pl.BlockSpec((num_heads, hfp), lambda i: (0, 0)),      # head-expansion rows
            pl.BlockSpec((1, hfp), lambda i: (0, 0)),              # denominator-column mask
            pl.BlockSpec((1, num_heads), lambda i: (0, 0)),        # per-head softmax stabilizer
            pl.BlockSpec((npad, hfp), lambda i: (0, 0)),           # skip + bias
            pl.BlockSpec((edge_block, 1), lambda i: (i, 0)),       # src ids (column layout)
            pl.BlockSpec((edge_block, 1), lambda i: (i, 0)),       # trg ids (column layout)
            pl.BlockSpec((1, edge_block), lambda i: (0, i)),       # trg ids (row layout)
        ],
        out_specs=pl.BlockSpec((npad, hfp), lambda i: (0, 0)),     # resident accumulator
    )

    out_p = pl.pallas_call(
        _gat_edge_kernel,
        out_shape=jax.ShapeDtypeStruct((npad, hfp), f32),
        grid_spec=grid_spec,
        compiler_params=pltpu.CompilerParams(
            dimension_semantics=("arbitrary",),     # edge axis is a reduction into out_ref
        ),
    )(combo_w, hexp, dmask, m2, sb_p, src_col, trg_col, trg_row)

    out = out_p[:n, num_heads:num_heads + hf].astype(x.dtype)
    return out, edge_index


def _reference_forward(x, edge_index, params, num_heads, num_out_features):
    """Pure-JAX (f32) reference mirroring the torch code (eval mode)."""
    n, f_in = x.shape
    proj = (x @ params["w"]).reshape(n, num_heads, num_out_features)
    ss = (proj * params["a_src"][None]).sum(-1)
    st = (proj * params["a_trg"][None]).sum(-1)
    src, trg = edge_index[0], edge_index[1]
    e = ss[src] + st[trg]
    e = jnp.where(e > 0, e, 0.2 * e)
    e = e - e.max()
    exp_e = jnp.exp(e)
    denom = jax.ops.segment_sum(exp_e, trg, num_segments=n)[trg]
    attn = exp_e / (denom + 1e-16)
    weighted = proj[src] * attn[..., None]
    out = jax.ops.segment_sum(weighted, trg, num_segments=n)
    if num_out_features == f_in:
        out = out + x[:, None, :]
    else:
        out = out + (x @ params["w_skip"]).reshape(n, num_heads, num_out_features)
    out = out.reshape(n, num_heads * num_out_features) + params["bias"]
    return jnp.where(out > 0, out, jnp.exp(out) - 1.0)


def _xavier_uniform(key, shape, fan_in, fan_out, dtype=jnp.float32):
    bound = (6.0 / (fan_in + fan_out)) ** 0.5
    return jax.random.uniform(key, shape, dtype=dtype, minval=-bound, maxval=bound)


if __name__ == "__main__":
    # small GAT config: F_in=16, F_out=8, H=4, N=32 nodes, E=300 edges (2 edge blocks of 256)
    N, F_IN, F_OUT, H, E = 32, 16, 8, 4, 300
    HF = H * F_OUT

    key = jax.random.PRNGKey(0)
    kx, ke1, ke2, kw, ks1, ks2, kskip = jax.random.split(key, 7)

    x = jax.random.normal(kx, (N, F_IN), dtype=jnp.float32)
    src = jax.random.randint(ke1, (E,), 0, N, dtype=jnp.int32)
    trg = jax.random.randint(ke2, (E,), 0, N, dtype=jnp.int32)
    edge_index = jnp.stack([src, trg], axis=0)                            # (2, E)

    params = {
        # linear_proj.weight is (H*F_out, F_in) in torch; stored transposed for x @ w
        "w": _xavier_uniform(kw, (F_IN, HF), fan_in=F_IN, fan_out=HF),
        # scoring_fn_{source,target}: torch shape (1, H, F_out) -> stored (H, F_out)
        "a_src": _xavier_uniform(ks1, (H, F_OUT), fan_in=H * F_OUT, fan_out=F_OUT),
        "a_trg": _xavier_uniform(ks2, (H, F_OUT), fan_in=H * F_OUT, fan_out=F_OUT),
        "w_skip": _xavier_uniform(kskip, (F_IN, HF), fan_in=F_IN, fan_out=HF),
        "bias": jnp.zeros((HF,), dtype=jnp.float32),                      # zeros per init_params
    }

    out, _ = gat_layer_imp3_forward(x, edge_index, params, H, F_OUT)
    out = jax.block_until_ready(out)

    ref = _reference_forward(x, edge_index, params, H, F_OUT)
    assert out.shape == (N, HF)
    # bf16 MXU operands inside the kernel (f32 accumulation) -> ~0.4% relative rounding
    assert jnp.allclose(out, ref, atol=2e-2, rtol=2e-2), "mismatch vs reference"

    print("KERNEL_OK")
</pallas_src>

<mosaic_0001>
module attributes {stable_mosaic.version = 11 : i64} {
  func.func @_gat_edge_kernel(%arg0: i32, %arg1: memref<128x128xbf16, #tpu.memory_space<vmem>>, %arg2: memref<4x128xf32, #tpu.memory_space<vmem>>, %arg3: memref<1x128xf32, #tpu.memory_space<vmem>>, %arg4: memref<1x4xf32, #tpu.memory_space<vmem>>, %arg5: memref<64x128xf32, #tpu.memory_space<vmem>>, %arg6: memref<256x1xi32, #tpu.memory_space<vmem>>, %arg7: memref<256x1xi32, #tpu.memory_space<vmem>>, %arg8: memref<1x256xi32, #tpu.memory_space<vmem>>, %arg9: memref<64x128xf32, #tpu.memory_space<vmem>>) attributes {dimension_semantics = [#tpu.dimension_semantics<arbitrary>], iteration_bounds = array<i64: 2>, scalar_prefetch = 0 : i64, scratch_operands = 0 : i64, tpu.core_type = #tpu.core_type<tc>, window_params = [{pipeline_mode = #tpu.pipeline_mode<synchronous>, transform_indices = @transform_0, window_bounds = array<i64: 128, 128>}, {pipeline_mode = #tpu.pipeline_mode<synchronous>, transform_indices = @transform_1, window_bounds = array<i64: 4, 128>}, {pipeline_mode = #tpu.pipeline_mode<synchronous>, transform_indices = @transform_2, window_bounds = array<i64: 1, 128>}, {pipeline_mode = #tpu.pipeline_mode<synchronous>, transform_indices = @transform_3, window_bounds = array<i64: 1, 4>}, {pipeline_mode = #tpu.pipeline_mode<synchronous>, transform_indices = @transform_4, window_bounds = array<i64: 64, 128>}, {transform_indices = @transform_5, window_bounds = array<i64: 256, 1>}, {transform_indices = @transform_6, window_bounds = array<i64: 256, 1>}, {transform_indices = @transform_7, window_bounds = array<i64: 1, 256>}, {pipeline_mode = #tpu.pipeline_mode<synchronous>, transform_indices = @transform_8, window_bounds = array<i64: 64, 128>}]} {
    %c0_i32 = arith.constant 0 : i32
    %0 = arith.cmpi eq, %arg0, %c0_i32 : i32
    %1 = arith.extui %0 : i1 to i32
    %c0_i32_0 = arith.constant 0 : i32
    %2 = arith.cmpi ne, %1, %c0_i32_0 : i32
    scf.if %2 {
      %cst_25 = arith.constant 0.000000e+00 : f32
      %77 = vector.broadcast %cst_25 : f32 to vector<64x128xf32>
      %c0_26 = arith.constant 0 : index
      %c0_27 = arith.constant 0 : index
      %78 = vector.load %arg9[%c0_26, %c0_27] : memref<64x128xf32, #tpu.memory_space<vmem>>, vector<64x128xf32>
      tpu.vector_store %arg9[%c0_26, %c0_27], %77 {strides = array<i32>} : memref<64x128xf32, #tpu.memory_space<vmem>>, vector<64x128xf32>,
    } else {
    }
    %3 = tpu.iota {dimensions = array<i32: 1>} : vector<256x128xi32>
    %c0 = arith.constant 0 : index
    %c0_1 = arith.constant 0 : index
    %4 = vector.load %arg6[%c0, %c0_1] : memref<256x1xi32, #tpu.memory_space<vmem>>, vector<256x1xi32>
    %5 = vector.broadcast %4 : vector<256x1xi32> to vector<256x128xi32>
    %6 = arith.cmpi eq, %3, %5 : vector<256x128xi32>
    %c0_2 = arith.constant 0 : index
    %c0_3 = arith.constant 0 : index
    %7 = vector.load %arg7[%c0_2, %c0_3] : memref<256x1xi32, #tpu.memory_space<vmem>>, vector<256x1xi32>
    %c64_i32 = arith.constant 64 : i32
    %8 = vector.broadcast %c64_i32 : i32 to vector<256x1xi32>
    %9 = arith.addi %7, %8 : vector<256x1xi32>
    %10 = vector.broadcast %9 : vector<256x1xi32> to vector<256x128xi32>
    %11 = arith.cmpi eq, %3, %10 : vector<256x128xi32>
    %12 = arith.ori %6, %11 : vector<256x128xi1>
    %13 = arith.extui %12 : vector<256x128xi1> to vector<256x128xi32>
    %14 = arith.sitofp %13 : vector<256x128xi32> to vector<256x128xf32>
    %15 = arith.truncf %14 : vector<256x128xf32> to vector<256x128xbf16>
    %16 = tpu.iota {dimensions = array<i32: 0>} : vector<64x256xi32>
    %c0_4 = arith.constant 0 : index
    %c0_5 = arith.constant 0 : index
    %17 = vector.load %arg8[%c0_4, %c0_5] : memref<1x256xi32, #tpu.memory_space<vmem>>, vector<1x256xi32>
    %18 = vector.broadcast %17 : vector<1x256xi32> to vector<64x256xi32>
    %19 = arith.cmpi eq, %16, %18 : vector<64x256xi32>
    %20 = arith.extui %19 : vector<64x256xi1> to vector<64x256xi32>
    %21 = arith.sitofp %20 : vector<64x256xi32> to vector<64x256xf32>
    %22 = arith.truncf %21 : vector<64x256xf32> to vector<64x256xbf16>
    %c0_6 = arith.constant 0 : index
    %c0_7 = arith.constant 0 : index
    %23 = vector.load %arg1[%c0_6, %c0_7] : memref<128x128xbf16, #tpu.memory_space<vmem>>, vector<128x128xbf16>
    %cst = arith.constant dense<0.000000e+00> : vector<256x128xf32>
    %24 = tpu.matmul %15, %23, %cst {dimension_numbers = #tpu.dot_dimension_numbers<[1], [0], [0], [1], [0, 0, 1, 1], [], []>} : vector<256x128xbf16>, vector<128x128xbf16>, vector<256x128xf32> -> vector<256x128xf32>
    %25 = vector.extract_strided_slice %24 {offsets = [0, 0], sizes = [256, 4], strides = [1, 1]} : vector<256x128xf32> to vector<256x4xf32>
    %cst_8 = arith.constant 0.000000e+00 : f32
    %26 = vector.broadcast %cst_8 : f32 to vector<256x4xf32>
    %27 = arith.cmpf ogt, %25, %26 : vector<256x4xf32>
    %cst_9 = arith.constant 2.000000e-01 : f32
    %28 = vector.broadcast %cst_9 : f32 to vector<256x4xf32>
    %29 = arith.mulf %28, %25 : vector<256x4xf32>
    %30 = arith.select %27, %25, %29 : vector<256x4xi1>, vector<256x4xf32>
    %c0_10 = arith.constant 0 : index
    %c0_11 = arith.constant 0 : index
    %31 = vector.load %arg4[%c0_10, %c0_11] : memref<1x4xf32, #tpu.memory_space<vmem>>, vector<1x4xf32>
    %32 = vector.broadcast %31 : vector<1x4xf32> to vector<256x4xf32>
    %33 = arith.subf %30, %32 : vector<256x4xf32>
    %cst_12 = arith.constant 0.000000e+00 : f32
    %34 = vector.broadcast %cst_12 : f32 to vector<256x4xf32>
    %35 = arith.minimumf %33, %34 : vector<256x4xf32>
    %36 = math.exp %35 : vector<256x4xf32>
    %c0_13 = arith.constant 0 : index
    %c0_14 = arith.constant 0 : index
    %37 = vector.load %arg2[%c0_13, %c0_14] : memref<4x128xf32, #tpu.memory_space<vmem>>, vector<4x128xf32>
    %38 = vector.extract_strided_slice %36 {offsets = [0, 0], sizes = [256, 1], strides = [1, 1]} : vector<256x4xf32> to vector<256x1xf32>
    %39 = vector.extract_strided_slice %37 {offsets = [0, 0], sizes = [1, 128], strides = [1, 1]} : vector<4x128xf32> to vector<1x128xf32>
    %40 = vector.broadcast %38 : vector<256x1xf32> to vector<256x128xf32>
    %41 = vector.broadcast %39 : vector<1x128xf32> to vector<256x128xf32>
    %42 = arith.mulf %40, %41 : vector<256x128xf32>
    %43 = vector.extract_strided_slice %36 {offsets = [0, 1], sizes = [256, 1], strides = [1, 1]} : vector<256x4xf32> to vector<256x1xf32>
    %44 = vector.extract_strided_slice %37 {offsets = [1, 0], sizes = [1, 128], strides = [1, 1]} : vector<4x128xf32> to vector<1x128xf32>
    %45 = vector.broadcast %43 : vector<256x1xf32> to vector<256x128xf32>
    %46 = vector.broadcast %44 : vector<1x128xf32> to vector<256x128xf32>
    %47 = arith.mulf %45, %46 : vector<256x128xf32>
    %48 = vector.extract_strided_slice %36 {offsets = [0, 2], sizes = [256, 1], strides = [1, 1]} : vector<256x4xf32> to vector<256x1xf32>
    %49 = vector.extract_strided_slice %37 {offsets = [2, 0], sizes = [1, 128], strides = [1, 1]} : vector<4x128xf32> to vector<1x128xf32>
    %50 = vector.broadcast %48 : vector<256x1xf32> to vector<256x128xf32>
    %51 = vector.broadcast %49 : vector<1x128xf32> to vector<256x128xf32>
    %52 = arith.mulf %50, %51 : vector<256x128xf32>
    %53 = vector.extract_strided_slice %36 {offsets = [0, 3], sizes = [256, 1], strides = [1, 1]} : vector<256x4xf32> to vector<256x1xf32>
    %54 = vector.extract_strided_slice %37 {offsets = [3, 0], sizes = [1, 128], strides = [1, 1]} : vector<4x128xf32> to vector<1x128xf32>
    %55 = vector.broadcast %53 : vector<256x1xf32> to vector<256x128xf32>
    %56 = vector.broadcast %54 : vector<1x128xf32> to vector<256x128xf32>
    %57 = arith.mulf %55, %56 : vector<256x128xf32>
    %58 = arith.addf %42, %47 : vector<256x128xf32>
    %59 = arith.addf %52, %57 : vector<256x128xf32>
    %60 = arith.addf %58, %59 : vector<256x128xf32>
    %c0_15 = arith.constant 0 : index
    %c0_16 = arith.constant 0 : index
    %61 = vector.load %arg3[%c0_15, %c0_16] : memref<1x128xf32, #tpu.memory_space<vmem>>, vector<1x128xf32>
    %cst_17 = arith.constant 0.000000e+00 : f32
    %62 = vector.broadcast %cst_17 : f32 to vector<1x128xf32>
    %63 = arith.cmpf one, %61, %62 : vector<1x128xf32>
    %cst_18 = arith.constant 1.000000e+00 : f32
    %64 = vector.shape_cast %63 : vector<1x128xi1> to vector<1x128xi1>
    %65 = vector.broadcast %64 : vector<1x128xi1> to vector<256x128xi1>
    %66 = vector.broadcast %cst_18 : f32 to vector<256x128xf32>
    %67 = arith.select %65, %66, %24 : vector<256x128xi1>, vector<256x128xf32>
    %68 = arith.mulf %60, %67 : vector<256x128xf32>
    %69 = arith.truncf %68 : vector<256x128xf32> to vector<256x128xbf16>
    %c0_19 = arith.constant 0 : index
    %c0_20 = arith.constant 0 : index
    %70 = vector.load %arg9[%c0_19, %c0_20] : memref<64x128xf32, #tpu.memory_space<vmem>>, vector<64x128xf32>
    %cst_21 = arith.constant dense<0.000000e+00> : vector<64x128xf32>
    %71 = tpu.matmul %22, %69, %cst_21 {dimension_numbers = #tpu.dot_dimension_numbers<[1], [0], [0], [1], [0, 0, 1, 1], [], []>} : vector<64x256xbf16>, vector<256x128xbf16>, vector<64x128xf32> -> vector<64x128xf32>
    %72 = arith.addf %70, %71 : vector<64x128xf32>
    %c0_22 = arith.constant 0 : index
    %c0_23 = arith.constant 0 : index
    %73 = vector.load %arg9[%c0_22, %c0_23] : memref<64x128xf32, #tpu.memory_space<vmem>>, vector<64x128xf32>
    tpu.vector_store %arg9[%c0_22, %c0_23], %72 {strides = array<i32>} : memref<64x128xf32, #tpu.memory_space<vmem>>, vector<64x128xf32>,
    %c1_i32 = arith.constant 1 : i32
    %74 = arith.cmpi eq, %arg0, %c1_i32 : i32
    %75 = arith.extui %74 : i1 to i32
    %c0_i32_24 = arith.constant 0 : i32
    %76 = arith.cmpi ne, %75, %c0_i32_24 : i32
    scf.if %76 {
      %c0_25 = arith.constant 0 : index
      %c0_26 = arith.constant 0 : index
      %77 = vector.load %arg9[%c0_25, %c0_26] : memref<64x128xf32, #tpu.memory_space<vmem>>, vector<64x128xf32>
      %78 = vector.extract_strided_slice %77 {offsets = [0, 0], sizes = [64, 4], strides = [1, 1]} : vector<64x128xf32> to vector<64x4xf32>
      %cst_27 = arith.constant 1.000000e-16 : f32
      %79 = vector.broadcast %cst_27 : f32 to vector<64x4xf32>
      %80 = arith.addf %78, %79 : vector<64x4xf32>
      %81 = tpu.reciprocal %80 : vector<64x4xf32> -> vector<64x4xf32>
      %c0_28 = arith.constant 0 : index
      %c0_29 = arith.constant 0 : index
      %82 = vector.load %arg2[%c0_28, %c0_29] : memref<4x128xf32, #tpu.memory_space<vmem>>, vector<4x128xf32>
      %83 = vector.extract_strided_slice %81 {offsets = [0, 0], sizes = [64, 1], strides = [1, 1]} : vector<64x4xf32> to vector<64x1xf32>
      %84 = vector.extract_strided_slice %82 {offsets = [0, 0], sizes = [1, 128], strides = [1, 1]} : vector<4x128xf32> to vector<1x128xf32>
      %85 = vector.broadcast %83 : vector<64x1xf32> to vector<64x128xf32>
      %86 = vector.broadcast %84 : vector<1x128xf32> to vector<64x128xf32>
      %87 = arith.mulf %85, %86 : vector<64x128xf32>
      %88 = vector.extract_strided_slice %81 {offsets = [0, 1], sizes = [64, 1], strides = [1, 1]} : vector<64x4xf32> to vector<64x1xf32>
      %89 = vector.extract_strided_slice %82 {offsets = [1, 0], sizes = [1, 128], strides = [1, 1]} : vector<4x128xf32> to vector<1x128xf32>
      %90 = vector.broadcast %88 : vector<64x1xf32> to vector<64x128xf32>
      %91 = vector.broadcast %89 : vector<1x128xf32> to vector<64x128xf32>
      %92 = arith.mulf %90, %91 : vector<64x128xf32>
      %93 = vector.extract_strided_slice %81 {offsets = [0, 2], sizes = [64, 1], strides = [1, 1]} : vector<64x4xf32> to vector<64x1xf32>
      %94 = vector.extract_strided_slice %82 {offsets = [2, 0], sizes = [1, 128], strides = [1, 1]} : vector<4x128xf32> to vector<1x128xf32>
      %95 = vector.broadcast %93 : vector<64x1xf32> to vector<64x128xf32>
      %96 = vector.broadcast %94 : vector<1x128xf32> to vector<64x128xf32>
      %97 = arith.mulf %95, %96 : vector<64x128xf32>
      %98 = vector.extract_strided_slice %81 {offsets = [0, 3], sizes = [64, 1], strides = [1, 1]} : vector<64x4xf32> to vector<64x1xf32>
      %99 = vector.extract_strided_slice %82 {offsets = [3, 0], sizes = [1, 128], strides = [1, 1]} : vector<4x128xf32> to vector<1x128xf32>
      %100 = vector.broadcast %98 : vector<64x1xf32> to vector<64x128xf32>
      %101 = vector.broadcast %99 : vector<1x128xf32> to vector<64x128xf32>
      %102 = arith.mulf %100, %101 : vector<64x128xf32>
      %103 = arith.addf %87, %92 : vector<64x128xf32>
      %104 = arith.addf %97, %102 : vector<64x128xf32>
      %105 = arith.addf %103, %104 : vector<64x128xf32>
      %106 = arith.mulf %77, %105 : vector<64x128xf32>
      %c0_30 = arith.constant 0 : index
      %c0_31 = arith.constant 0 : index
      %107 = vector.load %arg5[%c0_30, %c0_31] : memref<64x128xf32, #tpu.memory_space<vmem>>, vector<64x128xf32>
      %108 = arith.addf %106, %107 : vector<64x128xf32>
      %cst_32 = arith.constant 0.000000e+00 : f32
      %109 = vector.broadcast %cst_32 : f32 to vector<64x128xf32>
      %110 = arith.cmpf ogt, %108, %109 : vector<64x128xf32>
      %cst_33 = arith.constant 0.000000e+00 : f32
      %111 = vector.broadcast %cst_33 : f32 to vector<64x128xf32>
      %112 = arith.minimumf %108, %111 : vector<64x128xf32>
      %113 = math.exp %112 : vector<64x128xf32>
      %cst_34 = arith.constant 1.000000e+00 : f32
      %114 = vector.broadcast %cst_34 : f32 to vector<64x128xf32>
      %115 = arith.subf %113, %114 : vector<64x128xf32>
      %116 = arith.select %110, %108, %115 : vector<64x128xi1>, vector<64x128xf32>
      %c0_35 = arith.constant 0 : index
      %c0_36 = arith.constant 0 : index
      %117 = vector.load %arg9[%c0_35, %c0_36] : memref<64x128xf32, #tpu.memory_space<vmem>>, vector<64x128xf32>
      tpu.vector_store %arg9[%c0_35, %c0_36], %116 {strides = array<i32>} : memref<64x128xf32, #tpu.memory_space<vmem>>, vector<64x128xf32>,
    } else {
    }
    return
  }
  func.func @transform_0(%arg0: i32) -> (i32, i32) {
    %c0_i32 = arith.constant 0 : i32
    %c0_i32_0 = arith.constant 0 : i32
    %c0_i32_1 = arith.constant 0 : i32
    return %c0_i32, %c0_i32_0 : i32, i32
  }
  func.func @transform_1(%arg0: i32) -> (i32, i32) {
    %c0_i32 = arith.constant 0 : i32
    %c0_i32_0 = arith.constant 0 : i32
    %c0_i32_1 = arith.constant 0 : i32
    return %c0_i32, %c0_i32_0 : i32, i32
  }
  func.func @transform_2(%arg0: i32) -> (i32, i32) {
    %c0_i32 = arith.constant 0 : i32
    %c0_i32_0 = arith.constant 0 : i32
    %c0_i32_1 = arith.constant 0 : i32
    return %c0_i32, %c0_i32_0 : i32, i32
  }
  func.func @transform_3(%arg0: i32) -> (i32, i32) {
    %c0_i32 = arith.constant 0 : i32
    %c0_i32_0 = arith.constant 0 : i32
    %c0_i32_1 = arith.constant 0 : i32
    return %c0_i32, %c0_i32_0 : i32, i32
  }
  func.func @transform_4(%arg0: i32) -> (i32, i32) {
    %c0_i32 = arith.constant 0 : i32
    %c0_i32_0 = arith.constant 0 : i32
    %c0_i32_1 = arith.constant 0 : i32
    return %c0_i32, %c0_i32_0 : i32, i32
  }
  func.func @transform_5(%arg0: i32) -> (i32, i32) {
    %c0_i32 = arith.constant 0 : i32
    %c0_i32_0 = arith.constant 0 : i32
    return %arg0, %c0_i32 : i32, i32
  }
  func.func @transform_6(%arg0: i32) -> (i32, i32) {
    %c0_i32 = arith.constant 0 : i32
    %c0_i32_0 = arith.constant 0 : i32
    return %arg0, %c0_i32 : i32, i32
  }
  func.func @transform_7(%arg0: i32) -> (i32, i32) {
    %c0_i32 = arith.constant 0 : i32
    %c0_i32_0 = arith.constant 0 : i32
    return %c0_i32, %arg0 : i32, i32
  }
  func.func @transform_8(%arg0: i32) -> (i32, i32) {
    %c0_i32 = arith.constant 0 : i32
    %c0_i32_0 = arith.constant 0 : i32
    %c0_i32_1 = arith.constant 0 : i32
    return %c0_i32, %c0_i32_0 : i32, i32
  }
}

</mosaic_0001>

<llo_original>
// kernel: tpu_custom_call.1
$region0: #{tpu_custom_call.1}
  #allocation0 [shape = 'u32[]', space=smem, size = 0x4, offset = 0x4, fixed_abs, tag = 'smem constant byte address 0x4 - core index']
  #allocation1 [shape = 'u32[144,128]{1,0:T(1,128)}', space=vmem, size = 0x12000, scoped, tag = 'internal scratch']
  %s0 = inlined_call_operand.vmem [shape: bf16[128,128], index: 0, kind: input, shape index: {}]
  %s1 = inlined_call_operand.vmem [shape: f32[4,128], index: 1, kind: input, shape index: {}]
  %s2 = inlined_call_operand.vmem [shape: f32[1,128], index: 2, kind: input, shape index: {}]
  %s3 = inlined_call_operand.vmem [shape: f32[1,4], index: 3, kind: input, shape index: {}]
  %s4 = inlined_call_operand.vmem [shape: f32[64,128], index: 4, kind: input, shape index: {}]
  %s5 = inlined_call_operand.vmem [shape: s32[512,1], index: 5, kind: input, shape index: {}]
  %s6 = inlined_call_operand.vmem [shape: s32[512,1], index: 6, kind: input, shape index: {}]
  %s7 = inlined_call_operand.vmem [shape: s32[1,512], index: 7, kind: input, shape index: {}]
  %s8 = inlined_call_operand.hbm [shape: f32[64,128], index: 8, kind: output, shape index: {}]
  %s9 = sld [smem:[#allocation0]]
  $region73: #{tpu_custom_call.1} parent=0
    _
  %s11 = ssub.s32 1, %s9
  %s12 = scalar_select 0, %s11, %s9
  $region1: #{tpu_custom_call.1} parent=0
    #allocation2 [shape = 'u8[32768]{0}', space=vmem, size = 0x8000, scoped, tag = 'output window, operand 0, single buffered']
    #allocation3 [shape = 's32[2]{0}', space=sflag, size = 0x8, scoped, tag = 'scoped memory for tpu_custom_call.1']
    %13 = vsyncpa [#allocation3], 0
    loop: start=0, step=1, limit=4
    $region2: #{tpu_custom_call.1} parent=1 // loop_pre_header
      _
    $region3: #{tpu_custom_call.1} parent=1 // loop_header
      %s15 = sphi 0, %s19
      %p16 = scmp.ge.s32.totalorder %s15, 4
      %s23 = sphi 0, %s23
      %s25 = sphi 0, %s23
      %s26 = sphi 0, %s25
      %s40 = sphi 0, %s26
      %s44 = sphi 0, %s44
      %s46 = sphi 0, %s44
      %s47 = sphi 0, %s46
      %s61 = sphi 0, %s47
      %s65 = sphi 0, %s65
      %s67 = sphi 0, %s65
      %s68 = sphi 0, %s67
      %s82 = sphi 0, %s68
      %s86 = sphi 0, %s86
      %s88 = sphi 0, %s86
      %s89 = sphi 0, %s88
      %s103 = sphi 0, %s89
      %s107 = sphi 0, %s107
      %s109 = sphi 0, %s107
      %s110 = sphi 0, %s109
      %s124 = sphi 0, %s110
      %s130 = sphi 0, %s132
      %s133 = sphi 0, %s130
      %s134 = sphi 0, %s133
      %s150 = sphi 0, %s134
      %s156 = sphi 0, %s158
      %s159 = sphi 0, %s156
      %s160 = sphi 0, %s159
      %s176 = sphi 0, %s160
      %s182 = sphi 0, %s184
      %s185 = sphi 0, %s182
      %s186 = sphi 0, %s185
      %s202 = sphi 0, %s186
      %s206 = sphi 0, %s206
      %s208 = sphi 0, %s206
      %s209 = sphi 0, %s208
      %s223 = sphi 0, %s209
    $region4: #{tpu_custom_call.1} parent=1 // loop_header_branch
      %18 = sbr.rel (%p16) target = $region8
    $region5: #{tpu_custom_call.1} parent=1 // loop_body
      %s20 = ssub.s32 %s15, 1
      %s21 = ssub.s32 %s15, 2
      %s22 = sadd.s32 %s15, 1
      %s24 = sadd.s32 %s23, 1
      %p27 = scmp.eq.s32.totalorder %s15, 1
      %p28 = scmp.ne.s32.totalorder %s23, %s25
      %p29 = scmp.eq.s32.totalorder %s15, 0
      %p30 = por %p28, %p29
      %p31 = scmp.ne.s32.totalorder %s23, %s25
      %p32 = scmp.eq.s32.totalorder %s20, 1
      %p33 = por %p31, %p32
      %p34 = scmp.ne.s32.totalorder %s25, %s26
      %p35 = scmp.eq.s32.totalorder %s20, 0
      %p36 = por %p34, %p35
      %p37 = scmp.ne.s32.totalorder %s25, %s26
      %p38 = scmp.eq.s32.totalorder %s21, 1
      %p39 = por %p37, %p38
      %p41 = scmp.ne.s32.totalorder %s26, %s40
      %p42 = scmp.eq.s32.totalorder %s21, 0
      %p43 = por %p41, %p42
      %s45 = sadd.s32 %s44, 1
      %p48 = scmp.eq.s32.totalorder %s15, 1
      %p49 = scmp.ne.s32.totalorder %s44, %s46
      %p50 = scmp.eq.s32.totalorder %s15, 0
      %p51 = por %p49, %p50
      %p52 = scmp.ne.s32.totalorder %s44, %s46
      %p53 = scmp.eq.s32.totalorder %s20, 1
      %p54 = por %p52, %p53
      %p55 = scmp.ne.s32.totalorder %s46, %s47
      %p56 = scmp.eq.s32.totalorder %s20, 0
      %p57 = por %p55, %p56
      %p58 = scmp.ne.s32.totalorder %s46, %s47
      %p59 = scmp.eq.s32.totalorder %s21, 1
      %p60 = por %p58, %p59
      %p62 = scmp.ne.s32.totalorder %s47, %s61
      %p63 = scmp.eq.s32.totalorder %s21, 0
      %p64 = por %p62, %p63
      %s66 = sadd.s32 %s65, 1
      %p69 = scmp.eq.s32.totalorder %s15, 1
      %p70 = scmp.ne.s32.totalorder %s65, %s67
      %p71 = scmp.eq.s32.totalorder %s15, 0
      %p72 = por %p70, %p71
      %p73 = scmp.ne.s32.totalorder %s65, %s67
      %p74 = scmp.eq.s32.totalorder %s20, 1
      %p75 = por %p73, %p74
      %p76 = scmp.ne.s32.totalorder %s67, %s68
      %p77 = scmp.eq.s32.totalorder %s20, 0
      %p78 = por %p76, %p77
      %p79 = scmp.ne.s32.totalorder %s67, %s68
      %p80 = scmp.eq.s32.totalorder %s21, 1
      %p81 = por %p79, %p80
      %p83 = scmp.ne.s32.totalorder %s68, %s82
      %p84 = scmp.eq.s32.totalorder %s21, 0
      %p85 = por %p83, %p84
      %s87 = sadd.s32 %s86, 1
      %p90 = scmp.eq.s32.totalorder %s15, 1
      %p91 = scmp.ne.s32.totalorder %s86, %s88
      %p92 = scmp.eq.s32.totalorder %s15, 0
      %p93 = por %p91, %p92
      %p94 = scmp.ne.s32.totalorder %s86, %s88
      %p95 = scmp.eq.s32.totalorder %s20, 1
      %p96 = por %p94, %p95
      %p97 = scmp.ne.s32.totalorder %s88, %s89
      %p98 = scmp.eq.s32.totalorder %s20, 0
      %p99 = por %p97, %p98
      %p100 = scmp.ne.s32.totalorder %s88, %s89
      %p101 = scmp.eq.s32.totalorder %s21, 1
      %p102 = por %p100, %p101
      %p104 = scmp.ne.s32.totalorder %s89, %s103
      %p105 = scmp.eq.s32.totalorder %s21, 0
      %p106 = por %p104, %p105
      %s108 = sadd.s32 %s107, 1
      %p111 = scmp.eq.s32.totalorder %s15, 1
      %p112 = scmp.ne.s32.totalorder %s107, %s109
      %p113 = scmp.eq.s32.totalorder %s15, 0
      %p114 = por %p112, %p113
      %p115 = scmp.ne.s32.totalorder %s107, %s109
      %p116 = scmp.eq.s32.totalorder %s20, 1
      %p117 = por %p115, %p116
      %p118 = scmp.ne.s32.totalorder %s109, %s110
      %p119 = scmp.eq.s32.totalorder %s20, 0
      %p120 = por %p118, %p119
      %p121 = scmp.ne.s32.totalorder %s109, %s110
      %p122 = scmp.eq.s32.totalorder %s21, 1
      %p123 = por %p121, %p122
      %p125 = scmp.ne.s32.totalorder %s110, %s124
      %p126 = scmp.eq.s32.totalorder %s21, 0
      %p127 = por %p125, %p126
      %s128 = ssub.s32 %s15, %s22
      %p129 = scmp.eq.s32.totalorder %s128, 0
      %s131 = sadd.s32 %s130, 1
      %s132 = scalar_select %p129, %s130, %s131
      %p135 = pneg %p129
      %p136 = scmp.eq.s32.totalorder %s15, 1
      %p137 = por %p135, %p136
      %p138 = scmp.ne.s32.totalorder %s130, %s133
      %p139 = scmp.eq.s32.totalorder %s15, 0
      %p140 = por %p138, %p139
      %p141 = scmp.ne.s32.totalorder %s130, %s133
      %p142 = scmp.eq.s32.totalorder %s20, 1
      %p143 = por %p141, %p142
      %p144 = scmp.ne.s32.totalorder %s133, %s134
      %p145 = scmp.eq.s32.totalorder %s20, 0
      %p146 = por %p144, %p145
      %p147 = scmp.ne.s32.totalorder %s133, %s134
      %p148 = scmp.eq.s32.totalorder %s21, 1
      %p149 = por %p147, %p148
      %p151 = scmp.ne.s32.totalorder %s134, %s150
      %p152 = scmp.eq.s32.totalorder %s21, 0
      %p153 = por %p151, %p152
      %s154 = ssub.s32 %s15, %s22
      %p155 = scmp.eq.s32.totalorder %s154, 0
      %s157 = sadd.s32 %s156, 1
      %s158 = scalar_select %p155, %s156, %s157
      %p161 = pneg %p155
      %p162 = scmp.eq.s32.totalorder %s15, 1
      %p163 = por %p161, %p162
      %p164 = scmp.ne.s32.totalorder %s156, %s159
      %p165 = scmp.eq.s32.totalorder %s15, 0
      %p166 = por %p164, %p165
      %p167 = scmp.ne.s32.totalorder %s156, %s159
      %p168 = scmp.eq.s32.totalorder %s20, 1
      %p169 = por %p167, %p168
      %p170 = scmp.ne.s32.totalorder %s159, %s160
      %p171 = scmp.eq.s32.totalorder %s20, 0
      %p172 = por %p170, %p171
      %p173 = scmp.ne.s32.totalorder %s159, %s160
      %p174 = scmp.eq.s32.totalorder %s21, 1
      %p175 = por %p173, %p174
      %p177 = scmp.ne.s32.totalorder %s160, %s176
      %p178 = scmp.eq.s32.totalorder %s21, 0
      %p179 = por %p177, %p178
      %s180 = ssub.s32 %s15, %s22
      %p181 = scmp.eq.s32.totalorder %s180, 0
      %s183 = sadd.s32 %s182, 1
      %s184 = scalar_select %p181, %s182, %s183
      %p187 = pneg %p181
      %p188 = scmp.eq.s32.totalorder %s15, 1
      %p189 = por %p187, %p188
      %p190 = scmp.ne.s32.totalorder %s182, %s185
      %p191 = scmp.eq.s32.totalorder %s15, 0
      %p192 = por %p190, %p191
      %p193 = scmp.ne.s32.totalorder %s182, %s185
      %p194 = scmp.eq.s32.totalorder %s20, 1
      %p195 = por %p193, %p194
      %p196 = scmp.ne.s32.totalorder %s185, %s186
      %p197 = scmp.eq.s32.totalorder %s20, 0
      %p198 = por %p196, %p197
      %p199 = scmp.ne.s32.totalorder %s185, %s186
      %p200 = scmp.eq.s32.totalorder %s21, 1
      %p201 = por %p199, %p200
      %p203 = scmp.ne.s32.totalorder %s186, %s202
      %p204 = scmp.eq.s32.totalorder %s21, 0
      %p205 = por %p203, %p204
      %s207 = sadd.s32 %s206, 1
      %p210 = scmp.eq.s32.totalorder %s15, 1
      %p211 = scmp.ne.s32.totalorder %s206, %s208
      %p212 = scmp.eq.s32.totalorder %s15, 0
      %p213 = por %p211, %p212
      %p214 = scmp.ne.s32.totalorder %s206, %s208
      %p215 = scmp.eq.s32.totalorder %s20, 1
      %p216 = por %p214, %p215
      %p217 = scmp.ne.s32.totalorder %s208, %s209
      %p218 = scmp.eq.s32.totalorder %s20, 0
      %p219 = por %p217, %p218
      %p220 = scmp.ne.s32.totalorder %s208, %s209
      %p221 = scmp.eq.s32.totalorder %s21, 1
      %p222 = por %p220, %p221
      %p224 = scmp.ne.s32.totalorder %s209, %s223
      %p225 = scmp.eq.s32.totalorder %s21, 0
      %p226 = por %p224, %p225
      %p227 = scmp.le.s32.totalorder 1, %s15
      %p228 = scmp.lt.s32.totalorder %s15, 3
      %p229 = pnand %p227, %p228
      %p230 = pneg %p229
      // Predicated region
      $region9: #{tpu_custom_call.1} parent=5 // pred_check
        _
      $region10: #{tpu_custom_call.1} parent=5 // pred_check_branch
        %232 = sbr.rel (%p229) target = $region12
      $region11: #{tpu_custom_call.1} parent=5 // pred_region
        %s233 = ssub.s32 %s15, 1
        // Predicated region
        $region13: #{tpu_custom_call.1} parent=11 // pred_check
          %p234 = pneg %p36
        $region14: #{tpu_custom_call.1} parent=11 // pred_check_branch
          %236 = sbr.rel (%p234) target = $region16
        $region15: #{tpu_custom_call.1} parent=11 // pred_region
          _
        $region16: #{tpu_custom_call.1} parent=11 // pred_fallthru
          _
        // Predicated region
        $region17: #{tpu_custom_call.1} parent=11 // pred_check
          %p237 = pneg %p57
        $region18: #{tpu_custom_call.1} parent=11 // pred_check_branch
          %239 = sbr.rel (%p237) target = $region20
        $region19: #{tpu_custom_call.1} parent=11 // pred_region
          _
        $region20: #{tpu_custom_call.1} parent=11 // pred_fallthru
          _
        // Predicated region
        $region21: #{tpu_custom_call.1} parent=11 // pred_check
          %p240 = pneg %p78
        $region22: #{tpu_custom_call.1} parent=11 // pred_check_branch
          %242 = sbr.rel (%p240) target = $region24
        $region23: #{tpu_custom_call.1} parent=11 // pred_region
          _
        $region24: #{tpu_custom_call.1} parent=11 // pred_fallthru
          _
        // Predicated region
        $region25: #{tpu_custom_call.1} parent=11 // pred_check
          %p243 = pneg %p99
        $region26: #{tpu_custom_call.1} parent=11 // pred_check_branch
          %245 = sbr.rel (%p243) target = $region28
        $region27: #{tpu_custom_call.1} parent=11 // pred_region
          _
        $region28: #{tpu_custom_call.1} parent=11 // pred_fallthru
          _
        // Predicated region
        $region29: #{tpu_custom_call.1} parent=11 // pred_check
          %p246 = pneg %p120
        $region30: #{tpu_custom_call.1} parent=11 // pred_check_branch
          %248 = sbr.rel (%p246) target = $region32
        $region31: #{tpu_custom_call.1} parent=11 // pred_region
          _
        $region32: #{tpu_custom_call.1} parent=11 // pred_fallthru
          _
      $region12: #{tpu_custom_call.1} parent=5 // pred_fallthru
        _
      %p249 = scmp.lt.s32.totalorder %s15, 2
      // Predicated region
      $region33: #{tpu_custom_call.1} parent=5 // pred_check
        %p250 = pneg %p249
      $region34: #{tpu_custom_call.1} parent=5 // pred_check_branch
        %252 = sbr.rel (%p250) target = $region36
      $region35: #{tpu_custom_call.1} parent=5 // pred_region
        // Predicated region
        $region37: #{tpu_custom_call.1} parent=35 // pred_check
          %p253 = pneg %p140
        $region38: #{tpu_custom_call.1} parent=35 // pred_check_branch
          %255 = sbr.rel (%p253) target = $region40
        $region39: #{tpu_custom_call.1} parent=35 // pred_region
          %s256 = smul.u32 32, %s15
          %p257 = scmp.lt.s32.totalorder %s256, 63
          %s258 = scalar_select %p257, %s256, 63
          %s259 = smul.addr %s258, 8
          %s260 = scalar_lea.vmem %s5, %s259
          %s261 = smul.u32 32, %s15
        $region40: #{tpu_custom_call.1} parent=35 // pred_fallthru
          _
        // Predicated region
        $region41: #{tpu_custom_call.1} parent=35 // pred_check
          %p262 = pneg %p166
        $region42: #{tpu_custom_call.1} parent=35 // pred_check_branch
          %264 = sbr.rel (%p262) target = $region44
        $region43: #{tpu_custom_call.1} parent=35 // pred_region
          %s265 = smul.u32 32, %s15
          %p266 = scmp.lt.s32.totalorder %s265, 63
          %s267 = scalar_select %p266, %s265, 63
          %s268 = smul.addr %s267, 8
          %s269 = scalar_lea.vmem %s6, %s268
          %s270 = smul.u32 32, %s15
        $region44: #{tpu_custom_call.1} parent=35 // pred_fallthru
          _
        // Predicated region
        $region45: #{tpu_custom_call.1} parent=35 // pred_check
          %p271 = pneg %p192
        $region46: #{tpu_custom_call.1} parent=35 // pred_check_branch
          %273 = sbr.rel (%p271) target = $region48
        $region47: #{tpu_custom_call.1} parent=35 // pred_region
          %s274 = smul.u32 2, %s15
          %p275 = scmp.lt.s32.totalorder %s274, 3
          %s276 = scalar_select %p275, %s274, 3
          %s277 = scalar_lea.vmem %s7, %s276
          %s278 = smul.u32 2, %s15
        $region48: #{tpu_custom_call.1} parent=35 // pred_fallthru
          _
      $region36: #{tpu_custom_call.1} parent=5 // pred_fallthru
        _
      %p279 = scmp.le.s32.totalorder 1, %s15
      %p280 = scmp.lt.s32.totalorder %s15, 3
      %p281 = pnand %p279, %p280
      %p282 = pneg %p281
      // Predicated region
      $region49: #{tpu_custom_call.1} parent=5 // pred_check
        _
      $region50: #{tpu_custom_call.1} parent=5 // pred_check_branch
        %284 = sbr.rel (%p281) target = $region52
      $region51: #{tpu_custom_call.1} parent=5 // pred_region
        %s285 = ssub.s32 %s15, 1
        %p286 = pneg %p36
        %p287 = pneg %p33
        %p288 = pneg %p57
        %p289 = pneg %p54
        %p290 = pneg %p78
        %p291 = pneg %p75
        %p292 = pneg %p99
        %p293 = pneg %p96
        %p294 = pneg %p120
        %p295 = pneg %p117
        %s296 = smul.u32 32, %s20
        %p297 = scmp.lt.s32.totalorder %s296, 63
        %s298 = scalar_select %p297, %s296, 63
        %s299 = smul.addr %s298, 8
        %s300 = scalar_lea.vmem %s5, %s299
        %p301 = pneg %p146
        %p302 = pneg %p143
        %s303 = smul.u32 32, %s20
        %p304 = scmp.lt.s32.totalorder %s303, 63
        %s305 = scalar_select %p304, %s303, 63
        %s306 = smul.addr %s305, 8
        %s307 = scalar_lea.vmem %s6, %s306
        %p308 = pneg %p172
        %p309 = pneg %p169
        %s310 = smul.u32 2, %s20
        %p311 = scmp.lt.s32.totalorder %s310, 3
        %s312 = scalar_select %p311, %s310, 3
        %s313 = scalar_lea.vmem %s7, %s312
        %p314 = pneg %p198
        %p315 = pneg %p195
        %p316 = pneg %p219
        %p317 = pneg %p216
        %s318 = smul.u32 32, %s20
        %p319 = scmp.lt.s32.totalorder %s318, 63
        %s320 = scalar_select %p319, %s318, 63
        %s321 = smul.addr %s320, 8
        %s322 = scalar_lea.vmem %s5, %s321
        %s323 = smul.u32 32, %s20
        %s324 = smul.u32 32, %s20
        %p325 = scmp.lt.s32.totalorder %s324, 63
        %s326 = scalar_select %p325, %s324, 63
        %s327 = smul.addr %s326, 8
        %s328 = scalar_lea.vmem %s6, %s327
        %s329 = smul.u32 32, %s20
        %s330 = smul.u32 2, %s20
        %p331 = scmp.lt.s32.totalorder %s330, 3
        %s332 = scalar_select %p331, %s330, 3
        %s333 = scalar_lea.vmem %s7, %s332
        %s334 = smul.u32 2, %s20
        %p336 = scmp.eq.s32.totalorder %s20, 0
        // Predicated region
        $region53: #{tpu_custom_call.1} parent=51 // pred_check
          %p337 = pneg %p336
        $region54: #{tpu_custom_call.1} parent=51 // pred_check_branch
          %339 = sbr.rel (%p337) target = $region56
        $region55: #{tpu_custom_call.1} parent=51 // pred_region
          %340 = vst [vmem:[#allocation2] sm:$0xff] 0.0
          %341 = vst [vmem:[#allocation2 + $0x8] sm:$0xff] 0.0
          %342 = vst [vmem:[#allocation2 + $0x10] sm:$0xff] 0.0
          %343 = vst [vmem:[#allocation2 + $0x18] sm:$0xff] 0.0
          %344 = vst [vmem:[#allocation2 + $0x20] sm:$0xff] 0.0
          %345 = vst [vmem:[#allocation2 + $0x28] sm:$0xff] 0.0
          %346 = vst [vmem:[#allocation2 + $0x30] sm:$0xff] 0.0
          %347 = vst [vmem:[#allocation2 + $0x38] sm:$0xff] 0.0
        $region56: #{tpu_custom_call.1} parent=51 // pred_fallthru
          _
        %v348 = vlaneseq
        %v349 = vand.u32 %v348, 127
        %v350 = vld [vmem:[%s322] sm:$0xff]
        %v351 = vld [vmem:[%s322 + $0x8] sm:$0xff]
        %v352 = vld [vmem:[%s322 + $0x10] sm:$0xff]
        %v353 = vld [vmem:[%s322 + $0x18] sm:$0xff]
        %v354 = vld [vmem:[%s322 + $0x20] sm:$0xff]
        %v355 = vld [vmem:[%s322 + $0x28] sm:$0xff]
        %v356 = vld [vmem:[%s322 + $0x30] sm:$0xff]
        %v357 = vld [vmem:[%s322 + $0x38] sm:$0xff]
        %v358 = vld [vmem:[%s322 + $0x40] sm:$0xff]
        %v359 = vld [vmem:[%s322 + $0x48] sm:$0xff]
        %v360 = vld [vmem:[%s322 + $0x50] sm:$0xff]
        %v361 = vld [vmem:[%s322 + $0x58] sm:$0xff]
        %v362 = vld [vmem:[%s322 + $0x60] sm:$0xff]
        %v363 = vld [vmem:[%s322 + $0x68] sm:$0xff]
        %v364 = vld [vmem:[%s322 + $0x70] sm:$0xff]
        %v365 = vld [vmem:[%s322 + $0x78] sm:$0xff]
        %v366 = vld [vmem:[%s322 + $0x80] sm:$0xff]
        %v367 = vld [vmem:[%s322 + $0x88] sm:$0xff]
        %v368 = vld [vmem:[%s322 + $0x90] sm:$0xff]
        %v369 = vld [vmem:[%s322 + $0x98] sm:$0xff]
        %v370 = vld [vmem:[%s322 + $0xa0] sm:$0xff]
        %v371 = vld [vmem:[%s322 + $0xa8] sm:$0xff]
        %v372 = vld [vmem:[%s322 + $0xb0] sm:$0xff]
        %v373 = vld [vmem:[%s322 + $0xb8] sm:$0xff]
        %v374 = vld [vmem:[%s322 + $0xc0] sm:$0xff]
        %v375 = vld [vmem:[%s322 + $0xc8] sm:$0xff]
        %v376 = vld [vmem:[%s322 + $0xd0] sm:$0xff]
        %v377 = vld [vmem:[%s322 + $0xd8] sm:$0xff]
        %v378 = vld [vmem:[%s322 + $0xe0] sm:$0xff]
        %v379 = vld [vmem:[%s322 + $0xe8] sm:$0xff]
        %v380 = vld [vmem:[%s322 + $0xf0] sm:$0xff]
        %v381 = vld [vmem:[%s322 + $0xf8] sm:$0xff]
        %382 = vset.pattern.permute.xlu0 0
        %383 = vperm.xlu0 %382, %v350
        %v384 = vpop.permute.xlu0 %383
        %385 = vset.pattern.permute.xlu0 0
        %386 = vperm.xlu0 %385, %v351
        %v387 = vpop.permute.xlu0 %386
        %388 = vset.pattern.permute.xlu0 0
        %389 = vperm.xlu0 %388, %v352
        %v390 = vpop.permute.xlu0 %389
        %391 = vset.pattern.permute.xlu0 0
        %392 = vperm.xlu0 %391, %v353
        %v393 = vpop.permute.xlu0 %392
        %394 = vset.pattern.permute.xlu0 0
        %395 = vperm.xlu0 %394, %v354
        %v396 = vpop.permute.xlu0 %395
        %397 = vset.pattern.permute.xlu0 0
        %398 = vperm.xlu0 %397, %v355
        %v399 = vpop.permute.xlu0 %398
        %400 = vset.pattern.permute.xlu0 0
        %401 = vperm.xlu0 %400, %v356
        %v402 = vpop.permute.xlu0 %401
        %403 = vset.pattern.permute.xlu0 0
        %404 = vperm.xlu0 %403, %v357
        %v405 = vpop.permute.xlu0 %404
        %406 = vset.pattern.permute.xlu0 0
        %407 = vperm.xlu0 %406, %v358
        %v408 = vpop.permute.xlu0 %407
        %409 = vset.pattern.permute.xlu0 0
        %410 = vperm.xlu0 %409, %v359
        %v411 = vpop.permute.xlu0 %410
        %412 = vset.pattern.permute.xlu0 0
        %413 = vperm.xlu0 %412, %v360
        %v414 = vpop.permute.xlu0 %413
        %415 = vset.pattern.permute.xlu0 0
        %416 = vperm.xlu0 %415, %v361
        %v417 = vpop.permute.xlu0 %416
        %418 = vset.pattern.permute.xlu0 0
        %419 = vperm.xlu0 %418, %v362
        %v420 = vpop.permute.xlu0 %419
        %421 = vset.pattern.permute.xlu0 0
        %422 = vperm.xlu0 %421, %v363
        %v423 = vpop.permute.xlu0 %422
        %424 = vset.pattern.permute.xlu0 0
        %425 = vperm.xlu0 %424, %v364
        %v426 = vpop.permute.xlu0 %425
        %427 = vset.pattern.permute.xlu0 0
        %428 = vperm.xlu0 %427, %v365
        %v429 = vpop.permute.xlu0 %428
        %430 = vset.pattern.permute.xlu0 0
        %431 = vperm.xlu0 %430, %v366
        %v432 = vpop.permute.xlu0 %431
        %433 = vset.pattern.permute.xlu0 0
        %434 = vperm.xlu0 %433, %v367
        %v435 = vpop.permute.xlu0 %434
        %436 = vset.pattern.permute.xlu0 0
        %437 = vperm.xlu0 %436, %v368
        %v438 = vpop.permute.xlu0 %437
        %439 = vset.pattern.permute.xlu0 0
        %440 = vperm.xlu0 %439, %v369
        %v441 = vpop.permute.xlu0 %440
        %442 = vset.pattern.permute.xlu0 0
        %443 = vperm.xlu0 %442, %v370
        %v444 = vpop.permute.xlu0 %443
        %445 = vset.pattern.permute.xlu0 0
        %446 = vperm.xlu0 %445, %v371
        %v447 = vpop.permute.xlu0 %446
        %448 = vset.pattern.permute.xlu0 0
        %449 = vperm.xlu0 %448, %v372
        %v450 = vpop.permute.xlu0 %449
        %451 = vset.pattern.permute.xlu0 0
        %452 = vperm.xlu0 %451, %v373
        %v453 = vpop.permute.xlu0 %452
        %454 = vset.pattern.permute.xlu0 0
        %455 = vperm.xlu0 %454, %v374
        %v456 = vpop.permute.xlu0 %455
        %457 = vset.pattern.permute.xlu0 0
        %458 = vperm.xlu0 %457, %v375
        %v459 = vpop.permute.xlu0 %458
        %460 = vset.pattern.permute.xlu0 0
        %461 = vperm.xlu0 %460, %v376
        %v462 = vpop.permute.xlu0 %461
        %463 = vset.pattern.permute.xlu0 0
        %464 = vperm.xlu0 %463, %v377
        %v465 = vpop.permute.xlu0 %464
        %466 = vset.pattern.permute.xlu0 0
        %467 = vperm.xlu0 %466, %v378
        %v468 = vpop.permute.xlu0 %467
        %469 = vset.pattern.permute.xlu0 0
        %470 = vperm.xlu0 %469, %v379
        %v471 = vpop.permute.xlu0 %470
        %472 = vset.pattern.permute.xlu0 0
        %473 = vperm.xlu0 %472, %v380
        %v474 = vpop.permute.xlu0 %473
        %475 = vset.pattern.permute.xlu0 0
        %476 = vperm.xlu0 %475, %v381
        %v477 = vpop.permute.xlu0 %476
        %vm478 = vcmp.eq.s32.totalorder %v349, %v384
        %vm479 = vcmp.eq.s32.totalorder %v349, %v387
        %vm480 = vcmp.eq.s32.totalorder %v349, %v390
        %vm481 = vcmp.eq.s32.totalorder %v349, %v393
        %vm482 = vcmp.eq.s32.totalorder %v349, %v396
        %vm483 = vcmp.eq.s32.totalorder %v349, %v399
        %vm484 = vcmp.eq.s32.totalorder %v349, %v402
        %vm485 = vcmp.eq.s32.totalorder %v349, %v405
        %vm486 = vcmp.eq.s32.totalorder %v349, %v408
        %vm487 = vcmp.eq.s32.totalorder %v349, %v411
        %vm488 = vcmp.eq.s32.totalorder %v349, %v414
        %vm489 = vcmp.eq.s32.totalorder %v349, %v417
        %vm490 = vcmp.eq.s32.totalorder %v349, %v420
        %vm491 = vcmp.eq.s32.totalorder %v349, %v423
        %vm492 = vcmp.eq.s32.totalorder %v349, %v426
        %vm493 = vcmp.eq.s32.totalorder %v349, %v429
        %vm494 = vcmp.eq.s32.totalorder %v349, %v432
        %vm495 = vcmp.eq.s32.totalorder %v349, %v435
        %vm496 = vcmp.eq.s32.totalorder %v349, %v438
        %vm497 = vcmp.eq.s32.totalorder %v349, %v441
        %vm498 = vcmp.eq.s32.totalorder %v349, %v444
        %vm499 = vcmp.eq.s32.totalorder %v349, %v447
        %vm500 = vcmp.eq.s32.totalorder %v349, %v450
        %vm501 = vcmp.eq.s32.totalorder %v349, %v453
        %vm502 = vcmp.eq.s32.totalorder %v349, %v456
        %vm503 = vcmp.eq.s32.totalorder %v349, %v459
        %vm504 = vcmp.eq.s32.totalorder %v349, %v462
        %vm505 = vcmp.eq.s32.totalorder %v349, %v465
        %vm506 = vcmp.eq.s32.totalorder %v349, %v468
        %vm507 = vcmp.eq.s32.totalorder %v349, %v471
        %vm508 = vcmp.eq.s32.totalorder %v349, %v474
        %vm509 = vcmp.eq.s32.totalorder %v349, %v477
        %v510 = vld [vmem:[%s328] sm:$0xff]
        %v511 = vld [vmem:[%s328 + $0x8] sm:$0xff]
        %v512 = vld [vmem:[%s328 + $0x10] sm:$0xff]
        %v513 = vld [vmem:[%s328 + $0x18] sm:$0xff]
        %v514 = vld [vmem:[%s328 + $0x20] sm:$0xff]
        %v515 = vld [vmem:[%s328 + $0x28] sm:$0xff]
        %v516 = vld [vmem:[%s328 + $0x30] sm:$0xff]
        %v517 = vld [vmem:[%s328 + $0x38] sm:$0xff]
        %v518 = vld [vmem:[%s328 + $0x40] sm:$0xff]
        %v519 = vld [vmem:[%s328 + $0x48] sm:$0xff]
        %v520 = vld [vmem:[%s328 + $0x50] sm:$0xff]
        %v521 = vld [vmem:[%s328 + $0x58] sm:$0xff]
        %v522 = vld [vmem:[%s328 + $0x60] sm:$0xff]
        %v523 = vld [vmem:[%s328 + $0x68] sm:$0xff]
        %v524 = vld [vmem:[%s328 + $0x70] sm:$0xff]
        %v525 = vld [vmem:[%s328 + $0x78] sm:$0xff]
        %v526 = vld [vmem:[%s328 + $0x80] sm:$0xff]
        %v527 = vld [vmem:[%s328 + $0x88] sm:$0xff]
        %v528 = vld [vmem:[%s328 + $0x90] sm:$0xff]
        %v529 = vld [vmem:[%s328 + $0x98] sm:$0xff]
        %v530 = vld [vmem:[%s328 + $0xa0] sm:$0xff]
        %v531 = vld [vmem:[%s328 + $0xa8] sm:$0xff]
        %v532 = vld [vmem:[%s328 + $0xb0] sm:$0xff]
        %v533 = vld [vmem:[%s328 + $0xb8] sm:$0xff]
        %v534 = vld [vmem:[%s328 + $0xc0] sm:$0xff]
        %v535 = vld [vmem:[%s328 + $0xc8] sm:$0xff]
        %v536 = vld [vmem:[%s328 + $0xd0] sm:$0xff]
        %v537 = vld [vmem:[%s328 + $0xd8] sm:$0xff]
        %v538 = vld [vmem:[%s328 + $0xe0] sm:$0xff]
        %v539 = vld [vmem:[%s328 + $0xe8] sm:$0xff]
        %v540 = vld [vmem:[%s328 + $0xf0] sm:$0xff]
        %v541 = vld [vmem:[%s328 + $0xf8] sm:$0xff]
        %v542 = vadd.s32 %v510, 64
        %v543 = vadd.s32 %v511, 64
        %v544 = vadd.s32 %v512, 64
        %v545 = vadd.s32 %v513, 64
        %v546 = vadd.s32 %v514, 64
        %v547 = vadd.s32 %v515, 64
        %v548 = vadd.s32 %v516, 64
        %v549 = vadd.s32 %v517, 64
        %v550 = vadd.s32 %v518, 64
        %v551 = vadd.s32 %v519, 64
        %v552 = vadd.s32 %v520, 64
        %v553 = vadd.s32 %v521, 64
        %v554 = vadd.s32 %v522, 64
        %v555 = vadd.s32 %v523, 64
        %v556 = vadd.s32 %v524, 64
        %v557 = vadd.s32 %v525, 64
        %v558 = vadd.s32 %v526, 64
        %v559 = vadd.s32 %v527, 64
        %v560 = vadd.s32 %v528, 64
        %v561 = vadd.s32 %v529, 64
        %v562 = vadd.s32 %v530, 64
        %v563 = vadd.s32 %v531, 64
        %v564 = vadd.s32 %v532, 64
        %v565 = vadd.s32 %v533, 64
        %v566 = vadd.s32 %v534, 64
        %v567 = vadd.s32 %v535, 64
        %v568 = vadd.s32 %v536, 64
        %v569 = vadd.s32 %v537, 64
        %v570 = vadd.s32 %v538, 64
        %v571 = vadd.s32 %v539, 64
        %v572 = vadd.s32 %v540, 64
        %v573 = vadd.s32 %v541, 64
        %574 = vset.pattern.permute.xlu0 0
        %575 = vperm.xlu0 %574, %v542
        %v576 = vpop.permute.xlu0 %575
        %577 = vset.pattern.permute.xlu0 0
        %578 = vperm.xlu0 %577, %v543
        %v579 = vpop.permute.xlu0 %578
        %580 = vset.pattern.permute.xlu0 0
        %581 = vperm.xlu0 %580, %v544
        %v582 = vpop.permute.xlu0 %581
        %583 = vset.pattern.permute.xlu0 0
        %584 = vperm.xlu0 %583, %v545
        %v585 = vpop.permute.xlu0 %584
        %586 = vset.pattern.permute.xlu0 0
        %587 = vperm.xlu0 %586, %v546
        %v588 = vpop.permute.xlu0 %587
        %589 = vset.pattern.permute.xlu0 0
        %590 = vperm.xlu0 %589, %v547
        %v591 = vpop.permute.xlu0 %590
        %592 = vset.pattern.permute.xlu0 0
        %593 = vperm.xlu0 %592, %v548
        %v594 = vpop.permute.xlu0 %593
        %595 = vset.pattern.permute.xlu0 0
        %596 = vperm.xlu0 %595, %v549
        %v597 = vpop.permute.xlu0 %596
        %598 = vset.pattern.permute.xlu0 0
        %599 = vperm.xlu0 %598, %v550
        %v600 = vpop.permute.xlu0 %599
        %601 = vset.pattern.permute.xlu0 0
        %602 = vperm.xlu0 %601, %v551
        %v603 = vpop.permute.xlu0 %602
        %604 = vset.pattern.permute.xlu0 0
        %605 = vperm.xlu0 %604, %v552
        %v606 = vpop.permute.xlu0 %605
        %607 = vset.pattern.permute.xlu0 0
        %608 = vperm.xlu0 %607, %v553
        %v609 = vpop.permute.xlu0 %608
        %610 = vset.pattern.permute.xlu0 0
        %611 = vperm.xlu0 %610, %v554
        %v612 = vpop.permute.xlu0 %611
        %613 = vset.pattern.permute.xlu0 0
        %614 = vperm.xlu0 %613, %v555
        %v615 = vpop.permute.xlu0 %614
        %616 = vset.pattern.permute.xlu0 0
        %617 = vperm.xlu0 %616, %v556
        %v618 = vpop.permute.xlu0 %617
        %619 = vset.pattern.permute.xlu0 0
        %620 = vperm.xlu0 %619, %v557
        %v621 = vpop.permute.xlu0 %620
        %622 = vset.pattern.permute.xlu0 0
        %623 = vperm.xlu0 %622, %v558
        %v624 = vpop.permute.xlu0 %623
        %625 = vset.pattern.permute.xlu0 0
        %626 = vperm.xlu0 %625, %v559
        %v627 = vpop.permute.xlu0 %626
        %628 = vset.pattern.permute.xlu0 0
        %629 = vperm.xlu0 %628, %v560
        %v630 = vpop.permute.xlu0 %629
        %631 = vset.pattern.permute.xlu0 0
        %632 = vperm.xlu0 %631, %v561
        %v633 = vpop.permute.xlu0 %632
        %634 = vset.pattern.permute.xlu0 0
        %635 = vperm.xlu0 %634, %v562
        %v636 = vpop.permute.xlu0 %635
        %637 = vset.pattern.permute.xlu0 0
        %638 = vperm.xlu0 %637, %v563
        %v639 = vpop.permute.xlu0 %638
        %640 = vset.pattern.permute.xlu0 0
        %641 = vperm.xlu0 %640, %v564
        %v642 = vpop.permute.xlu0 %641
        %643 = vset.pattern.permute.xlu0 0
        %644 = vperm.xlu0 %643, %v565
        %v645 = vpop.permute.xlu0 %644
        %646 = vset.pattern.permute.xlu0 0
        %647 = vperm.xlu0 %646, %v566
        %v648 = vpop.permute.xlu0 %647
        %649 = vset.pattern.permute.xlu0 0
        %650 = vperm.xlu0 %649, %v567
        %v651 = vpop.permute.xlu0 %650
        %652 = vset.pattern.permute.xlu0 0
        %653 = vperm.xlu0 %652, %v568
        %v654 = vpop.permute.xlu0 %653
        %655 = vset.pattern.permute.xlu0 0
        %656 = vperm.xlu0 %655, %v569
        %v657 = vpop.permute.xlu0 %656
        %658 = vset.pattern.permute.xlu0 0
        %659 = vperm.xlu0 %658, %v570
        %v660 = vpop.permute.xlu0 %659
        %661 = vset.pattern.permute.xlu0 0
        %662 = vperm.xlu0 %661, %v571
        %v663 = vpop.permute.xlu0 %662
        %664 = vset.pattern.permute.xlu0 0
        %665 = vperm.xlu0 %664, %v572
        %v666 = vpop.permute.xlu0 %665
        %667 = vset.pattern.permute.xlu0 0
        %668 = vperm.xlu0 %667, %v573
        %v669 = vpop.permute.xlu0 %668
        %vm670 = vcmp.eq.s32.totalorder %v349, %v576
        %vm671 = vcmp.eq.s32.totalorder %v349, %v579
        %vm672 = vcmp.eq.s32.totalorder %v349, %v582
        %vm673 = vcmp.eq.s32.totalorder %v349, %v585
        %vm674 = vcmp.eq.s32.totalorder %v349, %v588
        %vm675 = vcmp.eq.s32.totalorder %v349, %v591
        %vm676 = vcmp.eq.s32.totalorder %v349, %v594
        %vm677 = vcmp.eq.s32.totalorder %v349, %v597
        %vm678 = vcmp.eq.s32.totalorder %v349, %v600
        %vm679 = vcmp.eq.s32.totalorder %v349, %v603
        %vm680 = vcmp.eq.s32.totalorder %v349, %v606
        %vm681 = vcmp.eq.s32.totalorder %v349, %v609
        %vm682 = vcmp.eq.s32.totalorder %v349, %v612
        %vm683 = vcmp.eq.s32.totalorder %v349, %v615
        %vm684 = vcmp.eq.s32.totalorder %v349, %v618
        %vm685 = vcmp.eq.s32.totalorder %v349, %v621
        %vm686 = vcmp.eq.s32.totalorder %v349, %v624
        %vm687 = vcmp.eq.s32.totalorder %v349, %v627
        %vm688 = vcmp.eq.s32.totalorder %v349, %v630
        %vm689 = vcmp.eq.s32.totalorder %v349, %v633
        %vm690 = vcmp.eq.s32.totalorder %v349, %v636
        %vm691 = vcmp.eq.s32.totalorder %v349, %v639
        %vm692 = vcmp.eq.s32.totalorder %v349, %v642
        %vm693 = vcmp.eq.s32.totalorder %v349, %v645
        %vm694 = vcmp.eq.s32.totalorder %v349, %v648
        %vm695 = vcmp.eq.s32.totalorder %v349, %v651
        %vm696 = vcmp.eq.s32.totalorder %v349, %v654
        %vm697 = vcmp.eq.s32.totalorder %v349, %v657
        %vm698 = vcmp.eq.s32.totalorder %v349, %v660
        %vm699 = vcmp.eq.s32.totalorder %v349, %v663
        %vm700 = vcmp.eq.s32.totalorder %v349, %v666
        %vm701 = vcmp.eq.s32.totalorder %v349, %v669
        %vm702 = vmor %vm478, %vm670
        %vm703 = vmor %vm479, %vm671
        %vm704 = vmor %vm480, %vm672
        %vm705 = vmor %vm481, %vm673
        %vm706 = vmor %vm482, %vm674
        %vm707 = vmor %vm483, %vm675
        %vm708 = vmor %vm484, %vm676
        %vm709 = vmor %vm485, %vm677
        %vm710 = vmor %vm486, %vm678
        %vm711 = vmor %vm487, %vm679
        %vm712 = vmor %vm488, %vm680
        %vm713 = vmor %vm489, %vm681
        %vm714 = vmor %vm490, %vm682
        %vm715 = vmor %vm491, %vm683
        %vm716 = vmor %vm492, %vm684
        %vm717 = vmor %vm493, %vm685
        %vm718 = vmor %vm494, %vm686
        %vm719 = vmor %vm495, %vm687
        %vm720 = vmor %vm496, %vm688
        %vm721 = vmor %vm497, %vm689
        %vm722 = vmor %vm498, %vm690
        %vm723 = vmor %vm499, %vm691
        %vm724 = vmor %vm500, %vm692
        %vm725 = vmor %vm501, %vm693
        %vm726 = vmor %vm502, %vm694
        %vm727 = vmor %vm503, %vm695
        %vm728 = vmor %vm504, %vm696
        %vm729 = vmor %vm505, %vm697
        %vm730 = vmor %vm506, %vm698
        %vm731 = vmor %vm507, %vm699
        %vm732 = vmor %vm508, %vm700
        %vm733 = vmor %vm509, %vm701
        %v734 = vsel %vm702, 1, 0
        %v735 = vsel %vm703, 1, 0
        %v736 = vsel %vm704, 1, 0
        %v737 = vsel %vm705, 1, 0
        %v738 = vsel %vm706, 1, 0
        %v739 = vsel %vm707, 1, 0
        %v740 = vsel %vm708, 1, 0
        %v741 = vsel %vm709, 1, 0
        %v742 = vsel %vm710, 1, 0
        %v743 = vsel %vm711, 1, 0
        %v744 = vsel %vm712, 1, 0
        %v745 = vsel %vm713, 1, 0
        %v746 = vsel %vm714, 1, 0
        %v747 = vsel %vm715, 1, 0
        %v748 = vsel %vm716, 1, 0
        %v749 = vsel %vm717, 1, 0
        %v750 = vsel %vm718, 1, 0
        %v751 = vsel %vm719, 1, 0
        %v752 = vsel %vm720, 1, 0
        %v753 = vsel %vm721, 1, 0
        %v754 = vsel %vm722, 1, 0
        %v755 = vsel %vm723, 1, 0
        %v756 = vsel %vm724, 1, 0
        %v757 = vsel %vm725, 1, 0
        %v758 = vsel %vm726, 1, 0
        %v759 = vsel %vm727, 1, 0
        %v760 = vsel %vm728, 1, 0
        %v761 = vsel %vm729, 1, 0
        %v762 = vsel %vm730, 1, 0
        %v763 = vsel %vm731, 1, 0
        %v764 = vsel %vm732, 1, 0
        %v765 = vsel %vm733, 1, 0
        %v766 = vcvt.s32.f32 %v734
        %v767 = vcvt.s32.f32 %v735
        %v768 = vcvt.s32.f32 %v736
        %v769 = vcvt.s32.f32 %v737
        %v770 = vcvt.s32.f32 %v738
        %v771 = vcvt.s32.f32 %v739
        %v772 = vcvt.s32.f32 %v740
        %v773 = vcvt.s32.f32 %v741
        %v774 = vcvt.s32.f32 %v742
        %v775 = vcvt.s32.f32 %v743
        %v776 = vcvt.s32.f32 %v744
        %v777 = vcvt.s32.f32 %v745
        %v778 = vcvt.s32.f32 %v746
        %v779 = vcvt.s32.f32 %v747
        %v780 = vcvt.s32.f32 %v748
        %v781 = vcvt.s32.f32 %v749
        %v782 = vcvt.s32.f32 %v750
        %v783 = vcvt.s32.f32 %v751
        %v784 = vcvt.s32.f32 %v752
        %v785 = vcvt.s32.f32 %v753
        %v786 = vcvt.s32.f32 %v754
        %v787 = vcvt.s32.f32 %v755
        %v788 = vcvt.s32.f32 %v756
        %v789 = vcvt.s32.f32 %v757
        %v790 = vcvt.s32.f32 %v758
        %v791 = vcvt.s32.f32 %v759
        %v792 = vcvt.s32.f32 %v760
        %v793 = vcvt.s32.f32 %v761
        %v794 = vcvt.s32.f32 %v762
        %v795 = vcvt.s32.f32 %v763
        %v796 = vcvt.s32.f32 %v764
        %v797 = vcvt.s32.f32 %v765
        %v798 = vpack.c.bf16 %v767, %v766
        %v799 = vpack.c.bf16 %v769, %v768
        %v800 = vpack.c.bf16 %v771, %v770
        %v801 = vpack.c.bf16 %v773, %v772
        %v802 = vpack.c.bf16 %v775, %v774
        %v803 = vpack.c.bf16 %v777, %v776
        %v804 = vpack.c.bf16 %v779, %v778
        %v805 = vpack.c.bf16 %v781, %v780
        %v806 = vpack.c.bf16 %v783, %v782
        %v807 = vpack.c.bf16 %v785, %v784
        %v808 = vpack.c.bf16 %v787, %v786
        %v809 = vpack.c.bf16 %v789, %v788
        %v810 = vpack.c.bf16 %v791, %v790
        %v811 = vpack.c.bf16 %v793, %v792
        %v812 = vpack.c.bf16 %v795, %v794
        %v813 = vpack.c.bf16 %v797, %v796
        %v814 = vlaneseq
        %v815 = vshrl.u32 %v814, 7
        %v816 = vadd.s32 %v815, 8
        %v817 = vadd.s32 %v815, 16
        %v818 = vadd.s32 %v815, 24
        %v819 = vadd.s32 %v815, 32
        %v820 = vadd.s32 %v815, 40
        %v821 = vadd.s32 %v815, 48
        %v822 = vadd.s32 %v815, 56
        %v823 = vld [vmem:[%s333] sm:$0x3]
        %v824 = vlaneseq
        %v825 = vshrl.u32 %v824, 7
        %v826 = vsub.s32 0, %v825
        %v827 = vrot.slane %v823, %v826
        %v828 = vlaneseq
        %v829 = vshrl.u32 %v828, 7
        %v830 = vsub.s32 1, %v829
        %v831 = vrot.slane %v823, %v830
        %vm832 = vcmp.eq.s32.totalorder %v815, %v827
        %vm833 = vcmp.eq.s32.totalorder %v815, %v831
        %vm834 = vcmp.eq.s32.totalorder %v816, %v827
        %vm835 = vcmp.eq.s32.totalorder %v816, %v831
        %vm836 = vcmp.eq.s32.totalorder %v817, %v827
        %vm837 = vcmp.eq.s32.totalorder %v817, %v831
        %vm838 = vcmp.eq.s32.totalorder %v818, %v827
        %vm839 = vcmp.eq.s32.totalorder %v818, %v831
        %vm840 = vcmp.eq.s32.totalorder %v819, %v827
        %vm841 = vcmp.eq.s32.totalorder %v819, %v831
        %vm842 = vcmp.eq.s32.totalorder %v820, %v827
        %vm843 = vcmp.eq.s32.totalorder %v820, %v831
        %vm844 = vcmp.eq.s32.totalorder %v821, %v827
        %vm845 = vcmp.eq.s32.totalorder %v821, %v831
        %vm846 = vcmp.eq.s32.totalorder %v822, %v827
        %vm847 = vcmp.eq.s32.totalorder %v822, %v831
        %v848 = vsel %vm832, 1, 0
        %v849 = vsel %vm833, 1, 0
        %v850 = vsel %vm834, 1, 0
        %v851 = vsel %vm835, 1, 0
        %v852 = vsel %vm836, 1, 0
        %v853 = vsel %vm837, 1, 0
        %v854 = vsel %vm838, 1, 0
        %v855 = vsel %vm839, 1, 0
        %v856 = vsel %vm840, 1, 0
        %v857 = vsel %vm841, 1, 0
        %v858 = vsel %vm842, 1, 0
        %v859 = vsel %vm843, 1, 0
        %v860 = vsel %vm844, 1, 0
        %v861 = vsel %vm845, 1, 0
        %v862 = vsel %vm846, 1, 0
        %v863 = vsel %vm847, 1, 0
        %v864 = vcvt.s32.f32 %v848
        %v865 = vcvt.s32.f32 %v849
        %v866 = vcvt.s32.f32 %v850
        %v867 = vcvt.s32.f32 %v851
        %v868 = vcvt.s32.f32 %v852
        %v869 = vcvt.s32.f32 %v853
        %v870 = vcvt.s32.f32 %v854
        %v871 = vcvt.s32.f32 %v855
        %v872 = vcvt.s32.f32 %v856
        %v873 = vcvt.s32.f32 %v857
        %v874 = vcvt.s32.f32 %v858
        %v875 = vcvt.s32.f32 %v859
        %v876 = vcvt.s32.f32 %v860
        %v877 = vcvt.s32.f32 %v861
        %v878 = vcvt.s32.f32 %v862
        %v879 = vcvt.s32.f32 %v863
        %v880 = vpack.c.bf16 %v866, %v864
        %v881 = vpack.c.bf16 %v867, %v865
        %v882 = vpack.c.bf16 %v870, %v868
        %v883 = vpack.c.bf16 %v871, %v869
        %v884 = vpack.c.bf16 %v874, %v872
        %v885 = vpack.c.bf16 %v875, %v873
        %v886 = vpack.c.bf16 %v878, %v876
        %v887 = vpack.c.bf16 %v879, %v877
        %v888 = vld [vmem:[%s0] sm:$0xf]
        %v889 = vld [vmem:[%s0 + $0x4] sm:$0xf]
        %v890 = vld [vmem:[%s0 + $0x8] sm:$0xf]
        %v891 = vld [vmem:[%s0 + $0xc] sm:$0xf]
        %v892 = vld [vmem:[%s0 + $0x10] sm:$0xf]
        %v893 = vld [vmem:[%s0 + $0x14] sm:$0xf]
        %v894 = vld [vmem:[%s0 + $0x18] sm:$0xf]
        %v895 = vld [vmem:[%s0 + $0x1c] sm:$0xf]
        %v896 = vld [vmem:[%s0 + $0x20] sm:$0xf]
        %v897 = vld [vmem:[%s0 + $0x24] sm:$0xf]
        %v898 = vld [vmem:[%s0 + $0x28] sm:$0xf]
        %v899 = vld [vmem:[%s0 + $0x2c] sm:$0xf]
        %v900 = vld [vmem:[%s0 + $0x30] sm:$0xf]
        %v901 = vld [vmem:[%s0 + $0x34] sm:$0xf]
        %v902 = vld [vmem:[%s0 + $0x38] sm:$0xf]
        %v903 = vld [vmem:[%s0 + $0x3c] sm:$0xf]
        %v920 = vunpack.c.l.b16 %v888
        %v921 = vunpack.c.l.b16 %v889
        %v922 = vunpack.c.l.b16 %v890
        %v923 = vunpack.c.l.b16 %v891
        %v924 = vunpack.c.l.b16 %v892
        %v925 = vunpack.c.l.b16 %v893
        %v926 = vunpack.c.l.b16 %v894
        %v927 = vunpack.c.l.b16 %v895
        %v928 = vunpack.c.l.b16 %v896
        %v929 = vunpack.c.l.b16 %v897
        %v930 = vunpack.c.l.b16 %v898
        %v931 = vunpack.c.l.b16 %v899
        %v932 = vunpack.c.l.b16 %v900
        %v933 = vunpack.c.l.b16 %v901
        %v934 = vunpack.c.l.b16 %v902
        %v935 = vunpack.c.l.b16 %v903
        %v936 = vpack.c.b16 %v921, %v920
        %v937 = vpack.c.b16 %v923, %v922
        %v938 = vpack.c.b16 %v925, %v924
        %v939 = vpack.c.b16 %v927, %v926
        %v940 = vpack.c.b16 %v929, %v928
        %v941 = vpack.c.b16 %v931, %v930
        %v942 = vpack.c.b16 %v933, %v932
        %v943 = vpack.c.b16 %v935, %v934
        %952 = vmatprep.subr.bf16.mxu0 0
        %953 = vmatpush1.bf16.msra.mxu0 %v943
        %954 = vmatprep.subr.bf16.mxu0 0
        %955 = vmatpush1.bf16.msra.mxu0 %v942
        %956 = vmatprep.subr.bf16.mxu0 0
        %957 = vmatpush1.bf16.msra.mxu0 %v941
        %958 = vmatprep.subr.bf16.mxu0 0
        %959 = vmatpush1.bf16.msra.mxu0 %v940
        %960 = vmatprep.subr.bf16.mxu0 0
        %961 = vmatpush1.bf16.msra.mxu0 %v939
        %962 = vmatprep.subr.bf16.mxu0 0
        %963 = vmatpush1.bf16.msra.mxu0 %v938
        %964 = vmatprep.subr.bf16.mxu0 0
        %965 = vmatpush1.bf16.msra.mxu0 %v937
        %966 = vmatprep.subr.bf16.mxu0 0
        %967 = vmatpush1.bf16.msra.mxu0 %v936
        %968 = vmatprep.subr.bf16.mxu0 0
        %969 = vmatpush2.bf16.msra.mxu0 0
        %970 = vmatprep.subr.bf16.mxu0 0
        %971 = vmatpush2.bf16.msra.mxu0 0
        %972 = vmatprep.subr.bf16.mxu0 0
        %973 = vmatpush2.bf16.msra.mxu0 0
        %974 = vmatprep.subr.bf16.mxu0 0
        %975 = vmatpush2.bf16.msra.mxu0 0
        %976 = vmatprep.subr.bf16.mxu0 0
        %977 = vmatpush2.bf16.msra.mxu0 0
        %978 = vmatprep.subr.bf16.mxu0 0
        %979 = vmatpush2.bf16.msra.mxu0 0
        %980 = vmatprep.subr.bf16.mxu0 0
        %981 = vmatpush2.bf16.msra.mxu0 0
        %982 = vmatprep.subr.bf16.mxu0 0
        %983 = vmatpush2.bf16.msra.mxu0 0
        %984 = vmatprep.mubr.bf16.mxu0 0
        %985 = vmatmul.mubr.bf16.gmra.mxu0 %v798
        %v986 = vpop.f32.mrf.mxu0
        %v987 = vadd.f32 0.0, %v986
        %v988 = vpop.f32.mrf.mxu0
        %v989 = vpop.f32.mrf.mxu0
        %v990 = vadd.f32 0.0, %v989
        %v991 = vpop.f32.mrf.mxu0
        %992 = vmatprep.mubr.bf16.mxu0 0
        %993 = vmatmul.mubr.bf16.gmra.mxu0 %v799
        %v994 = vpop.f32.mrf.mxu0
        %v995 = vadd.f32 0.0, %v994
        %v996 = vpop.f32.mrf.mxu0
        %v997 = vpop.f32.mrf.mxu0
        %v998 = vadd.f32 0.0, %v997
        %v999 = vpop.f32.mrf.mxu0
        %1000 = vmatprep.mubr.bf16.mxu0 0
        %1001 = vmatmul.mubr.bf16.gmra.mxu0 %v800
        %v1002 = vpop.f32.mrf.mxu0
        %v1003 = vadd.f32 0.0, %v1002
        %v1004 = vpop.f32.mrf.mxu0
        %v1005 = vpop.f32.mrf.mxu0
        %v1006 = vadd.f32 0.0, %v1005
        %v1007 = vpop.f32.mrf.mxu0
        %1008 = vmatprep.mubr.bf16.mxu0 0
        %1009 = vmatmul.mubr.bf16.gmra.mxu0 %v801
        %v1010 = vpop.f32.mrf.mxu0
        %v1011 = vadd.f32 0.0, %v1010
        %v1012 = vpop.f32.mrf.mxu0
        %v1013 = vpop.f32.mrf.mxu0
        %v1014 = vadd.f32 0.0, %v1013
        %v1015 = vpop.f32.mrf.mxu0
        %1016 = vmatprep.mubr.bf16.mxu0 0
        %1017 = vmatmul.mubr.bf16.gmra.mxu0 %v802
        %v1018 = vpop.f32.mrf.mxu0
        %v1019 = vadd.f32 0.0, %v1018
        %v1020 = vpop.f32.mrf.mxu0
        %v1021 = vpop.f32.mrf.mxu0
        %v1022 = vadd.f32 0.0, %v1021
        %v1023 = vpop.f32.mrf.mxu0
        %1024 = vmatprep.mubr.bf16.mxu0 0
        %1025 = vmatmul.mubr.bf16.gmra.mxu0 %v803
        %v1026 = vpop.f32.mrf.mxu0
        %v1027 = vadd.f32 0.0, %v1026
        %v1028 = vpop.f32.mrf.mxu0
        %v1029 = vpop.f32.mrf.mxu0
        %v1030 = vadd.f32 0.0, %v1029
        %v1031 = vpop.f32.mrf.mxu0
        %1032 = vmatprep.mubr.bf16.mxu0 0
        %1033 = vmatmul.mubr.bf16.gmra.mxu0 %v804
        %v1034 = vpop.f32.mrf.mxu0
        %v1035 = vadd.f32 0.0, %v1034
        %v1036 = vpop.f32.mrf.mxu0
        %v1037 = vpop.f32.mrf.mxu0
        %v1038 = vadd.f32 0.0, %v1037
        %v1039 = vpop.f32.mrf.mxu0
        %1040 = vmatprep.mubr.bf16.mxu0 0
        %1041 = vmatmul.mubr.bf16.gmra.mxu0 %v805
        %v1042 = vpop.f32.mrf.mxu0
        %v1043 = vadd.f32 0.0, %v1042
        %v1044 = vpop.f32.mrf.mxu0
        %v1045 = vpop.f32.mrf.mxu0
        %v1046 = vadd.f32 0.0, %v1045
        %v1047 = vpop.f32.mrf.mxu0
        %1048 = vmatprep.mubr.bf16.mxu0 0
        %1049 = vmatmul.mubr.bf16.gmra.mxu0 %v806
        %v1050 = vpop.f32.mrf.mxu0
        %v1051 = vadd.f32 0.0, %v1050
        %v1052 = vpop.f32.mrf.mxu0
        %v1053 = vpop.f32.mrf.mxu0
        %v1054 = vadd.f32 0.0, %v1053
        %v1055 = vpop.f32.mrf.mxu0
        %1056 = vmatprep.mubr.bf16.mxu0 0
        %1057 = vmatmul.mubr.bf16.gmra.mxu0 %v807
        %v1058 = vpop.f32.mrf.mxu0
        %v1059 = vadd.f32 0.0, %v1058
        %v1060 = vpop.f32.mrf.mxu0
        %v1061 = vpop.f32.mrf.mxu0
        %v1062 = vadd.f32 0.0, %v1061
        %v1063 = vpop.f32.mrf.mxu0
        %1064 = vmatprep.mubr.bf16.mxu0 0
        %1065 = vmatmul.mubr.bf16.gmra.mxu0 %v808
        %v1066 = vpop.f32.mrf.mxu0
        %v1067 = vadd.f32 0.0, %v1066
        %v1068 = vpop.f32.mrf.mxu0
        %v1069 = vpop.f32.mrf.mxu0
        %v1070 = vadd.f32 0.0, %v1069
        %v1071 = vpop.f32.mrf.mxu0
        %1072 = vmatprep.mubr.bf16.mxu0 0
        %1073 = vmatmul.mubr.bf16.gmra.mxu0 %v809
        %v1074 = vpop.f32.mrf.mxu0
        %v1075 = vadd.f32 0.0, %v1074
        %v1076 = vpop.f32.mrf.mxu0
        %v1077 = vpop.f32.mrf.mxu0
        %v1078 = vadd.f32 0.0, %v1077
        %v1079 = vpop.f32.mrf.mxu0
        %1080 = vmatprep.mubr.bf16.mxu0 0
        %1081 = vmatmul.mubr.bf16.gmra.mxu0 %v810
        %v1082 = vpop.f32.mrf.mxu0
        %v1083 = vadd.f32 0.0, %v1082
        %v1084 = vpop.f32.mrf.mxu0
        %v1085 = vpop.f32.mrf.mxu0
        %v1086 = vadd.f32 0.0, %v1085
        %v1087 = vpop.f32.mrf.mxu0
        %1088 = vmatprep.mubr.bf16.mxu0 0
        %1089 = vmatmul.mubr.bf16.gmra.mxu0 %v811
        %v1090 = vpop.f32.mrf.mxu0
        %v1091 = vadd.f32 0.0, %v1090
        %v1092 = vpop.f32.mrf.mxu0
        %v1093 = vpop.f32.mrf.mxu0
        %v1094 = vadd.f32 0.0, %v1093
        %v1095 = vpop.f32.mrf.mxu0
        %1096 = vmatprep.mubr.bf16.mxu0 0
        %1097 = vmatmul.mubr.bf16.gmra.mxu0 %v812
        %v1098 = vpop.f32.mrf.mxu0
        %v1099 = vadd.f32 0.0, %v1098
        %v1100 = vpop.f32.mrf.mxu0
        %v1101 = vpop.f32.mrf.mxu0
        %v1102 = vadd.f32 0.0, %v1101
        %v1103 = vpop.f32.mrf.mxu0
        %1104 = vmatprep.mubr.bf16.mxu0 0
        %1105 = vmatmul.mubr.bf16.gmra.mxu0 %v813
        %v1106 = vpop.f32.mrf.mxu0
        %v1107 = vadd.f32 0.0, %v1106
        %v1108 = vpop.f32.mrf.mxu0
        %v1109 = vpop.f32.mrf.mxu0
        %v1110 = vadd.f32 0.0, %v1109
        %v1111 = vpop.f32.mrf.mxu0
        %1112 = vdwg.mxu0
        %vm1113 = vcmp.gt.f32.partialorder %v987, 0.0
        %vm1114 = vcmp.gt.f32.partialorder %v990, 0.0
        %vm1115 = vcmp.gt.f32.partialorder %v995, 0.0
        %vm1116 = vcmp.gt.f32.partialorder %v998, 0.0
        %vm1117 = vcmp.gt.f32.partialorder %v1003, 0.0
        %vm1118 = vcmp.gt.f32.partialorder %v1006, 0.0
        %vm1119 = vcmp.gt.f32.partialorder %v1011, 0.0
        %vm1120 = vcmp.gt.f32.partialorder %v1014, 0.0
        %vm1121 = vcmp.gt.f32.partialorder %v1019, 0.0
        %vm1122 = vcmp.gt.f32.partialorder %v1022, 0.0
        %vm1123 = vcmp.gt.f32.partialorder %v1027, 0.0
        %vm1124 = vcmp.gt.f32.partialorder %v1030, 0.0
        %vm1125 = vcmp.gt.f32.partialorder %v1035, 0.0
        %vm1126 = vcmp.gt.f32.partialorder %v1038, 0.0
        %vm1127 = vcmp.gt.f32.partialorder %v1043, 0.0
        %vm1128 = vcmp.gt.f32.partialorder %v1046, 0.0
        %vm1129 = vcmp.gt.f32.partialorder %v1051, 0.0
        %vm1130 = vcmp.gt.f32.partialorder %v1054, 0.0
        %vm1131 = vcmp.gt.f32.partialorder %v1059, 0.0
        %vm1132 = vcmp.gt.f32.partialorder %v1062, 0.0
        %vm1133 = vcmp.gt.f32.partialorder %v1067, 0.0
        %vm1134 = vcmp.gt.f32.partialorder %v1070, 0.0
        %vm1135 = vcmp.gt.f32.partialorder %v1075, 0.0
        %vm1136 = vcmp.gt.f32.partialorder %v1078, 0.0
        %vm1137 = vcmp.gt.f32.partialorder %v1083, 0.0
        %vm1138 = vcmp.gt.f32.partialorder %v1086, 0.0
        %vm1139 = vcmp.gt.f32.partialorder %v1091, 0.0
        %vm1140 = vcmp.gt.f32.partialorder %v1094, 0.0
        %vm1141 = vcmp.gt.f32.partialorder %v1099, 0.0
        %vm1142 = vcmp.gt.f32.partialorder %v1102, 0.0
        %vm1143 = vcmp.gt.f32.partialorder %v1107, 0.0
        %vm1144 = vcmp.gt.f32.partialorder %v1110, 0.0
        %v1145 = vmul.f32 %v987, 0.2
        %v1146 = vmul.f32 %v990, 0.2
        %v1147 = vmul.f32 %v995, 0.2
        %v1148 = vmul.f32 %v998, 0.2
        %v1149 = vmul.f32 %v1003, 0.2
        %v1150 = vmul.f32 %v1006, 0.2
        %v1151 = vmul.f32 %v1011, 0.2
        %v1152 = vmul.f32 %v1014, 0.2
        %v1153 = vmul.f32 %v1019, 0.2
        %v1154 = vmul.f32 %v1022, 0.2
        %v1155 = vmul.f32 %v1027, 0.2
        %v1156 = vmul.f32 %v1030, 0.2
        %v1157 = vmul.f32 %v1035, 0.2
        %v1158 = vmul.f32 %v1038, 0.2
        %v1159 = vmul.f32 %v1043, 0.2
        %v1160 = vmul.f32 %v1046, 0.2
        %v1161 = vmul.f32 %v1051, 0.2
        %v1162 = vmul.f32 %v1054, 0.2
        %v1163 = vmul.f32 %v1059, 0.2
        %v1164 = vmul.f32 %v1062, 0.2
        %v1165 = vmul.f32 %v1067, 0.2
        %v1166 = vmul.f32 %v1070, 0.2
        %v1167 = vmul.f32 %v1075, 0.2
        %v1168 = vmul.f32 %v1078, 0.2
        %v1169 = vmul.f32 %v1083, 0.2
        %v1170 = vmul.f32 %v1086, 0.2
        %v1171 = vmul.f32 %v1091, 0.2
        %v1172 = vmul.f32 %v1094, 0.2
        %v1173 = vmul.f32 %v1099, 0.2
        %v1174 = vmul.f32 %v1102, 0.2
        %v1175 = vmul.f32 %v1107, 0.2
        %v1176 = vmul.f32 %v1110, 0.2
        %v1177 = vsel %vm1113, %v987, %v1145
        %v1178 = vsel %vm1114, %v990, %v1146
        %v1179 = vsel %vm1115, %v995, %v1147
        %v1180 = vsel %vm1116, %v998, %v1148
        %v1181 = vsel %vm1117, %v1003, %v1149
        %v1182 = vsel %vm1118, %v1006, %v1150
        %v1183 = vsel %vm1119, %v1011, %v1151
        %v1184 = vsel %vm1120, %v1014, %v1152
        %v1185 = vsel %vm1121, %v1019, %v1153
        %v1186 = vsel %vm1122, %v1022, %v1154
        %v1187 = vsel %vm1123, %v1027, %v1155
        %v1188 = vsel %vm1124, %v1030, %v1156
        %v1189 = vsel %vm1125, %v1035, %v1157
        %v1190 = vsel %vm1126, %v1038, %v1158
        %v1191 = vsel %vm1127, %v1043, %v1159
        %v1192 = vsel %vm1128, %v1046, %v1160
        %v1193 = vsel %vm1129, %v1051, %v1161
        %v1194 = vsel %vm1130, %v1054, %v1162
        %v1195 = vsel %vm1131, %v1059, %v1163
        %v1196 = vsel %vm1132, %v1062, %v1164
        %v1197 = vsel %vm1133, %v1067, %v1165
        %v1198 = vsel %vm1134, %v1070, %v1166
        %v1199 = vsel %vm1135, %v1075, %v1167
        %v1200 = vsel %vm1136, %v1078, %v1168
        %v1201 = vsel %vm1137, %v1083, %v1169
        %v1202 = vsel %vm1138, %v1086, %v1170
        %v1203 = vsel %vm1139, %v1091, %v1171
        %v1204 = vsel %vm1140, %v1094, %v1172
        %v1205 = vsel %vm1141, %v1099, %v1173
        %v1206 = vsel %vm1142, %v1102, %v1174
        %v1207 = vsel %vm1143, %v1107, %v1175
        %v1208 = vsel %vm1144, %v1110, %v1176
        %v1209 = vld [vmem:[%s3] sm:$0x1]
        %v1211 = vlaneseq
        %v1212 = vshrl.u32 %v1211, 7
        %v1213 = vsub.s32 0, %v1212
        %v1214 = vrot.slane %v1209, %v1213
        %v1216 = vsub.f32 %v1177, %v1214
        %v1217 = vsub.f32 %v1178, %v1214
        %v1218 = vsub.f32 %v1179, %v1214
        %v1219 = vsub.f32 %v1180, %v1214
        %v1220 = vsub.f32 %v1181, %v1214
        %v1221 = vsub.f32 %v1182, %v1214
        %v1222 = vsub.f32 %v1183, %v1214
        %v1223 = vsub.f32 %v1184, %v1214
        %v1224 = vsub.f32 %v1185, %v1214
        %v1225 = vsub.f32 %v1186, %v1214
        %v1226 = vsub.f32 %v1187, %v1214
        %v1227 = vsub.f32 %v1188, %v1214
        %v1228 = vsub.f32 %v1189, %v1214
        %v1229 = vsub.f32 %v1190, %v1214
        %v1230 = vsub.f32 %v1191, %v1214
        %v1231 = vsub.f32 %v1192, %v1214
        %v1232 = vsub.f32 %v1193, %v1214
        %v1233 = vsub.f32 %v1194, %v1214
        %v1234 = vsub.f32 %v1195, %v1214
        %v1235 = vsub.f32 %v1196, %v1214
        %v1236 = vsub.f32 %v1197, %v1214
        %v1237 = vsub.f32 %v1198, %v1214
        %v1238 = vsub.f32 %v1199, %v1214
        %v1239 = vsub.f32 %v1200, %v1214
        %v1240 = vsub.f32 %v1201, %v1214
        %v1241 = vsub.f32 %v1202, %v1214
        %v1242 = vsub.f32 %v1203, %v1214
        %v1243 = vsub.f32 %v1204, %v1214
        %v1244 = vsub.f32 %v1205, %v1214
        %v1245 = vsub.f32 %v1206, %v1214
        %v1246 = vsub.f32 %v1207, %v1214
        %v1247 = vsub.f32 %v1208, %v1214
        %v1248 = vmin.f32 %v1216, 0.0
        %v1249 = vmin.f32 %v1217, 0.0
        %v1250 = vmin.f32 %v1218, 0.0
        %v1251 = vmin.f32 %v1219, 0.0
        %v1252 = vmin.f32 %v1220, 0.0
        %v1253 = vmin.f32 %v1221, 0.0
        %v1254 = vmin.f32 %v1222, 0.0
        %v1255 = vmin.f32 %v1223, 0.0
        %v1256 = vmin.f32 %v1224, 0.0
        %v1257 = vmin.f32 %v1225, 0.0
        %v1258 = vmin.f32 %v1226, 0.0
        %v1259 = vmin.f32 %v1227, 0.0
        %v1260 = vmin.f32 %v1228, 0.0
        %v1261 = vmin.f32 %v1229, 0.0
        %v1262 = vmin.f32 %v1230, 0.0
        %v1263 = vmin.f32 %v1231, 0.0
        %v1264 = vmin.f32 %v1232, 0.0
        %v1265 = vmin.f32 %v1233, 0.0
        %v1266 = vmin.f32 %v1234, 0.0
        %v1267 = vmin.f32 %v1235, 0.0
        %v1268 = vmin.f32 %v1236, 0.0
        %v1269 = vmin.f32 %v1237, 0.0
        %v1270 = vmin.f32 %v1238, 0.0
        %v1271 = vmin.f32 %v1239, 0.0
        %v1272 = vmin.f32 %v1240, 0.0
        %v1273 = vmin.f32 %v1241, 0.0
        %v1274 = vmin.f32 %v1242, 0.0
        %v1275 = vmin.f32 %v1243, 0.0
        %v1276 = vmin.f32 %v1244, 0.0
        %v1277 = vmin.f32 %v1245, 0.0
        %v1278 = vmin.f32 %v1246, 0.0
        %v1279 = vmin.f32 %v1247, 0.0
        %v1280 = vmul.f32 %v1248, 1.442695
        %v1281 = vpow.pop %v1280
        %v1282 = vmul.f32 %v1249, 1.442695
        %v1283 = vpow.pop %v1282
        %v1284 = vmul.f32 %v1250, 1.442695
        %v1285 = vpow.pop %v1284
        %v1286 = vmul.f32 %v1251, 1.442695
        %v1287 = vpow.pop %v1286
        %v1288 = vmul.f32 %v1252, 1.442695
        %v1289 = vpow.pop %v1288
        %v1290 = vmul.f32 %v1253, 1.442695
        %v1291 = vpow.pop %v1290
        %v1292 = vmul.f32 %v1254, 1.442695
        %v1293 = vpow.pop %v1292
        %v1294 = vmul.f32 %v1255, 1.442695
        %v1295 = vpow.pop %v1294
        %v1296 = vmul.f32 %v1256, 1.442695
        %v1297 = vpow.pop %v1296
        %v1298 = vmul.f32 %v1257, 1.442695
        %v1299 = vpow.pop %v1298
        %v1300 = vmul.f32 %v1258, 1.442695
        %v1301 = vpow.pop %v1300
        %v1302 = vmul.f32 %v1259, 1.442695
        %v1303 = vpow.pop %v1302
        %v1304 = vmul.f32 %v1260, 1.442695
        %v1305 = vpow.pop %v1304
        %v1306 = vmul.f32 %v1261, 1.442695
        %v1307 = vpow.pop %v1306
        %v1308 = vmul.f32 %v1262, 1.442695
        %v1309 = vpow.pop %v1308
        %v1310 = vmul.f32 %v1263, 1.442695
        %v1311 = vpow.pop %v1310
        %v1312 = vmul.f32 %v1264, 1.442695
        %v1313 = vpow.pop %v1312
        %v1314 = vmul.f32 %v1265, 1.442695
        %v1315 = vpow.pop %v1314
        %v1316 = vmul.f32 %v1266, 1.442695
        %v1317 = vpow.pop %v1316
        %v1318 = vmul.f32 %v1267, 1.442695
        %v1319 = vpow.pop %v1318
        %v1320 = vmul.f32 %v1268, 1.442695
        %v1321 = vpow.pop %v1320
        %v1322 = vmul.f32 %v1269, 1.442695
        %v1323 = vpow.pop %v1322
        %v1324 = vmul.f32 %v1270, 1.442695
        %v1325 = vpow.pop %v1324
        %v1326 = vmul.f32 %v1271, 1.442695
        %v1327 = vpow.pop %v1326
        %v1328 = vmul.f32 %v1272, 1.442695
        %v1329 = vpow.pop %v1328
        %v1330 = vmul.f32 %v1273, 1.442695
        %v1331 = vpow.pop %v1330
        %v1332 = vmul.f32 %v1274, 1.442695
        %v1333 = vpow.pop %v1332
        %v1334 = vmul.f32 %v1275, 1.442695
        %v1335 = vpow.pop %v1334
        %v1336 = vmul.f32 %v1276, 1.442695
        %v1337 = vpow.pop %v1336
        %v1338 = vmul.f32 %v1277, 1.442695
        %v1339 = vpow.pop %v1338
        %v1340 = vmul.f32 %v1278, 1.442695
        %v1341 = vpow.pop %v1340
        %v1342 = vmul.f32 %v1279, 1.442695
        %v1343 = vpow.pop %v1342
        %v1344 = vld [vmem:[%s1] sm:$0xf]
        %1346 = vset.pattern.permute.xlu0 0
        %1347 = vperm.xlu0 %1346, %v1281
        %v1348 = vpop.permute.xlu0 %1347
        %1351 = vset.pattern.permute.xlu0 0
        %1352 = vperm.xlu0 %1351, %v1283
        %v1353 = vpop.permute.xlu0 %1352
        %1356 = vset.pattern.permute.xlu0 0
        %1357 = vperm.xlu0 %1356, %v1285
        %v1358 = vpop.permute.xlu0 %1357
        %1361 = vset.pattern.permute.xlu0 0
        %1362 = vperm.xlu0 %1361, %v1287
        %v1363 = vpop.permute.xlu0 %1362
        %1366 = vset.pattern.permute.xlu0 0
        %1367 = vperm.xlu0 %1366, %v1289
        %v1368 = vpop.permute.xlu0 %1367
        %1371 = vset.pattern.permute.xlu0 0
        %1372 = vperm.xlu0 %1371, %v1291
        %v1373 = vpop.permute.xlu0 %1372
        %1376 = vset.pattern.permute.xlu0 0
        %1377 = vperm.xlu0 %1376, %v1293
        %v1378 = vpop.permute.xlu0 %1377
        %1381 = vset.pattern.permute.xlu0 0
        %1382 = vperm.xlu0 %1381, %v1295
        %v1383 = vpop.permute.xlu0 %1382
        %1386 = vset.pattern.permute.xlu0 0
        %1387 = vperm.xlu0 %1386, %v1297
        %v1388 = vpop.permute.xlu0 %1387
        %1391 = vset.pattern.permute.xlu0 0
        %1392 = vperm.xlu0 %1391, %v1299
        %v1393 = vpop.permute.xlu0 %1392
        %1396 = vset.pattern.permute.xlu0 0
        %1397 = vperm.xlu0 %1396, %v1301
        %v1398 = vpop.permute.xlu0 %1397
        %1401 = vset.pattern.permute.xlu0 0
        %1402 = vperm.xlu0 %1401, %v1303
        %v1403 = vpop.permute.xlu0 %1402
        %1406 = vset.pattern.permute.xlu0 0
        %1407 = vperm.xlu0 %1406, %v1305
        %v1408 = vpop.permute.xlu0 %1407
        %1411 = vset.pattern.permute.xlu0 0
        %1412 = vperm.xlu0 %1411, %v1307
        %v1413 = vpop.permute.xlu0 %1412
        %1416 = vset.pattern.permute.xlu0 0
        %1417 = vperm.xlu0 %1416, %v1309
        %v1418 = vpop.permute.xlu0 %1417
        %1421 = vset.pattern.permute.xlu0 0
        %1422 = vperm.xlu0 %1421, %v1311
        %v1423 = vpop.permute.xlu0 %1422
        %1426 = vset.pattern.permute.xlu0 0
        %1427 = vperm.xlu0 %1426, %v1313
        %v1428 = vpop.permute.xlu0 %1427
        %1431 = vset.pattern.permute.xlu0 0
        %1432 = vperm.xlu0 %1431, %v1315
        %v1433 = vpop.permute.xlu0 %1432
        %1436 = vset.pattern.permute.xlu0 0
        %1437 = vperm.xlu0 %1436, %v1317
        %v1438 = vpop.permute.xlu0 %1437
        %1441 = vset.pattern.permute.xlu0 0
        %1442 = vperm.xlu0 %1441, %v1319
        %v1443 = vpop.permute.xlu0 %1442
        %1446 = vset.pattern.permute.xlu0 0
        %1447 = vperm.xlu0 %1446, %v1321
        %v1448 = vpop.permute.xlu0 %1447
        %1451 = vset.pattern.permute.xlu0 0
        %1452 = vperm.xlu0 %1451, %v1323
        %v1453 = vpop.permute.xlu0 %1452
        %1456 = vset.pattern.permute.xlu0 0
        %1457 = vperm.xlu0 %1456, %v1325
        %v1458 = vpop.permute.xlu0 %1457
        %1461 = vset.pattern.permute.xlu0 0
        %1462 = vperm.xlu0 %1461, %v1327
        %v1463 = vpop.permute.xlu0 %1462
        %1466 = vset.pattern.permute.xlu0 0
        %1467 = vperm.xlu0 %1466, %v1329
        %v1468 = vpop.permute.xlu0 %1467
        %1471 = vset.pattern.permute.xlu0 0
        %1472 = vperm.xlu0 %1471, %v1331
        %v1473 = vpop.permute.xlu0 %1472
        %1476 = vset.pattern.permute.xlu0 0
        %1477 = vperm.xlu0 %1476, %v1333
        %v1478 = vpop.permute.xlu0 %1477
        %1481 = vset.pattern.permute.xlu0 0
        %1482 = vperm.xlu0 %1481, %v1335
        %v1483 = vpop.permute.xlu0 %1482
        %1486 = vset.pattern.permute.xlu0 0
        %1487 = vperm.xlu0 %1486, %v1337
        %v1488 = vpop.permute.xlu0 %1487
        %1491 = vset.pattern.permute.xlu0 0
        %1492 = vperm.xlu0 %1491, %v1339
        %v1493 = vpop.permute.xlu0 %1492
        %1496 = vset.pattern.permute.xlu0 0
        %1497 = vperm.xlu0 %1496, %v1341
        %v1498 = vpop.permute.xlu0 %1497
        %1501 = vset.pattern.permute.xlu0 0
        %1502 = vperm.xlu0 %1501, %v1343
        %v1503 = vpop.permute.xlu0 %1502
        %v1505 = vlaneseq
        %v1506 = vshrl.u32 %v1505, 7
        %v1507 = vsub.s32 0, %v1506
        %v1508 = vrot.slane %v1344, %v1507
        %v1509 = vmul.f32 %v1348, %v1508
        %v1510 = vmul.f32 %v1353, %v1508
        %v1511 = vmul.f32 %v1358, %v1508
        %v1512 = vmul.f32 %v1363, %v1508
        %v1513 = vmul.f32 %v1368, %v1508
        %v1514 = vmul.f32 %v1373, %v1508
        %v1515 = vmul.f32 %v1378, %v1508
        %v1516 = vmul.f32 %v1383, %v1508
        %v1517 = vmul.f32 %v1388, %v1508
        %v1518 = vmul.f32 %v1393, %v1508
        %v1519 = vmul.f32 %v1398, %v1508
        %v1520 = vmul.f32 %v1403, %v1508
        %v1521 = vmul.f32 %v1408, %v1508
        %v1522 = vmul.f32 %v1413, %v1508
        %v1523 = vmul.f32 %v1418, %v1508
        %v1524 = vmul.f32 %v1423, %v1508
        %v1525 = vmul.f32 %v1428, %v1508
        %v1526 = vmul.f32 %v1433, %v1508
        %v1527 = vmul.f32 %v1438, %v1508
        %v1528 = vmul.f32 %v1443, %v1508
        %v1529 = vmul.f32 %v1448, %v1508
        %v1530 = vmul.f32 %v1453, %v1508
        %v1531 = vmul.f32 %v1458, %v1508
        %v1532 = vmul.f32 %v1463, %v1508
        %v1533 = vmul.f32 %v1468, %v1508
        %v1534 = vmul.f32 %v1473, %v1508
        %v1535 = vmul.f32 %v1478, %v1508
        %v1536 = vmul.f32 %v1483, %v1508
        %v1537 = vmul.f32 %v1488, %v1508
        %v1538 = vmul.f32 %v1493, %v1508
        %v1539 = vmul.f32 %v1498, %v1508
        %v1540 = vmul.f32 %v1503, %v1508
        %1541 = vset.pattern.permute.xlu0 1
        %1542 = vperm.xlu0 %1541, %v1281
        %v1543 = vpop.permute.xlu0 %1542
        %1545 = vset.pattern.permute.xlu0 1
        %1546 = vperm.xlu0 %1545, %v1283
        %v1547 = vpop.permute.xlu0 %1546
        %1549 = vset.pattern.permute.xlu0 1
        %1550 = vperm.xlu0 %1549, %v1285
        %v1551 = vpop.permute.xlu0 %1550
        %1553 = vset.pattern.permute.xlu0 1
        %1554 = vperm.xlu0 %1553, %v1287
        %v1555 = vpop.permute.xlu0 %1554
        %1557 = vset.pattern.permute.xlu0 1
        %1558 = vperm.xlu0 %1557, %v1289
        %v1559 = vpop.permute.xlu0 %1558
        %1561 = vset.pattern.permute.xlu0 1
        %1562 = vperm.xlu0 %1561, %v1291
        %v1563 = vpop.permute.xlu0 %1562
        %1565 = vset.pattern.permute.xlu0 1
        %1566 = vperm.xlu0 %1565, %v1293
        %v1567 = vpop.permute.xlu0 %1566
        %1569 = vset.pattern.permute.xlu0 1
        %1570 = vperm.xlu0 %1569, %v1295
        %v1571 = vpop.permute.xlu0 %1570
        %1573 = vset.pattern.permute.xlu0 1
        %1574 = vperm.xlu0 %1573, %v1297
        %v1575 = vpop.permute.xlu0 %1574
        %1577 = vset.pattern.permute.xlu0 1
        %1578 = vperm.xlu0 %1577, %v1299
        %v1579 = vpop.permute.xlu0 %1578
        %1581 = vset.pattern.permute.xlu0 1
        %1582 = vperm.xlu0 %1581, %v1301
        %v1583 = vpop.permute.xlu0 %1582
        %1585 = vset.pattern.permute.xlu0 1
        %1586 = vperm.xlu0 %1585, %v1303
        %v1587 = vpop.permute.xlu0 %1586
        %1589 = vset.pattern.permute.xlu0 1
        %1590 = vperm.xlu0 %1589, %v1305
        %v1591 = vpop.permute.xlu0 %1590
        %1593 = vset.pattern.permute.xlu0 1
        %1594 = vperm.xlu0 %1593, %v1307
        %v1595 = vpop.permute.xlu0 %1594
        %1597 = vset.pattern.permute.xlu0 1
        %1598 = vperm.xlu0 %1597, %v1309
        %v1599 = vpop.permute.xlu0 %1598
        %1601 = vset.pattern.permute.xlu0 1
        %1602 = vperm.xlu0 %1601, %v1311
        %v1603 = vpop.permute.xlu0 %1602
        %1605 = vset.pattern.permute.xlu0 1
        %1606 = vperm.xlu0 %1605, %v1313
        %v1607 = vpop.permute.xlu0 %1606
        %1609 = vset.pattern.permute.xlu0 1
        %1610 = vperm.xlu0 %1609, %v1315
        %v1611 = vpop.permute.xlu0 %1610
        %1613 = vset.pattern.permute.xlu0 1
        %1614 = vperm.xlu0 %1613, %v1317
        %v1615 = vpop.permute.xlu0 %1614
        %1617 = vset.pattern.permute.xlu0 1
        %1618 = vperm.xlu0 %1617, %v1319
        %v1619 = vpop.permute.xlu0 %1618
        %1621 = vset.pattern.permute.xlu0 1
        %1622 = vperm.xlu0 %1621, %v1321
        %v1623 = vpop.permute.xlu0 %1622
        %1625 = vset.pattern.permute.xlu0 1
        %1626 = vperm.xlu0 %1625, %v1323
        %v1627 = vpop.permute.xlu0 %1626
        %1629 = vset.pattern.permute.xlu0 1
        %1630 = vperm.xlu0 %1629, %v1325
        %v1631 = vpop.permute.xlu0 %1630
        %1633 = vset.pattern.permute.xlu0 1
        %1634 = vperm.xlu0 %1633, %v1327
        %v1635 = vpop.permute.xlu0 %1634
        %1637 = vset.pattern.permute.xlu0 1
        %1638 = vperm.xlu0 %1637, %v1329
        %v1639 = vpop.permute.xlu0 %1638
        %1641 = vset.pattern.permute.xlu0 1
        %1642 = vperm.xlu0 %1641, %v1331
        %v1643 = vpop.permute.xlu0 %1642
        %1645 = vset.pattern.permute.xlu0 1
        %1646 = vperm.xlu0 %1645, %v1333
        %v1647 = vpop.permute.xlu0 %1646
        %1649 = vset.pattern.permute.xlu0 1
        %1650 = vperm.xlu0 %1649, %v1335
        %v1651 = vpop.permute.xlu0 %1650
        %1653 = vset.pattern.permute.xlu0 1
        %1654 = vperm.xlu0 %1653, %v1337
        %v1655 = vpop.permute.xlu0 %1654
        %1657 = vset.pattern.permute.xlu0 1
        %1658 = vperm.xlu0 %1657, %v1339
        %v1659 = vpop.permute.xlu0 %1658
        %1661 = vset.pattern.permute.xlu0 1
        %1662 = vperm.xlu0 %1661, %v1341
        %v1663 = vpop.permute.xlu0 %1662
        %1665 = vset.pattern.permute.xlu0 1
        %1666 = vperm.xlu0 %1665, %v1343
        %v1667 = vpop.permute.xlu0 %1666
        %v1669 = vlaneseq
        %v1670 = vshrl.u32 %v1669, 7
        %v1671 = vsub.s32 1, %v1670
        %v1672 = vrot.slane %v1344, %v1671
        %v1673 = vmul.f32 %v1543, %v1672
        %v1674 = vmul.f32 %v1547, %v1672
        %v1675 = vmul.f32 %v1551, %v1672
        %v1676 = vmul.f32 %v1555, %v1672
        %v1677 = vmul.f32 %v1559, %v1672
        %v1678 = vmul.f32 %v1563, %v1672
        %v1679 = vmul.f32 %v1567, %v1672
        %v1680 = vmul.f32 %v1571, %v1672
        %v1681 = vmul.f32 %v1575, %v1672
        %v1682 = vmul.f32 %v1579, %v1672
        %v1683 = vmul.f32 %v1583, %v1672
        %v1684 = vmul.f32 %v1587, %v1672
        %v1685 = vmul.f32 %v1591, %v1672
        %v1686 = vmul.f32 %v1595, %v1672
        %v1687 = vmul.f32 %v1599, %v1672
        %v1688 = vmul.f32 %v1603, %v1672
        %v1689 = vmul.f32 %v1607, %v1672
        %v1690 = vmul.f32 %v1611, %v1672
        %v1691 = vmul.f32 %v1615, %v1672
        %v1692 = vmul.f32 %v1619, %v1672
        %v1693 = vmul.f32 %v1623, %v1672
        %v1694 = vmul.f32 %v1627, %v1672
        %v1695 = vmul.f32 %v1631, %v1672
        %v1696 = vmul.f32 %v1635, %v1672
        %v1697 = vmul.f32 %v1639, %v1672
        %v1698 = vmul.f32 %v1643, %v1672
        %v1699 = vmul.f32 %v1647, %v1672
        %v1700 = vmul.f32 %v1651, %v1672
        %v1701 = vmul.f32 %v1655, %v1672
        %v1702 = vmul.f32 %v1659, %v1672
        %v1703 = vmul.f32 %v1663, %v1672
        %v1704 = vmul.f32 %v1667, %v1672
        %1705 = vset.pattern.permute.xlu0 2
        %1706 = vperm.xlu0 %1705, %v1281
        %v1707 = vpop.permute.xlu0 %1706
        %1709 = vset.pattern.permute.xlu0 2
        %1710 = vperm.xlu0 %1709, %v1283
        %v1711 = vpop.permute.xlu0 %1710
        %1713 = vset.pattern.permute.xlu0 2
        %1714 = vperm.xlu0 %1713, %v1285
        %v1715 = vpop.permute.xlu0 %1714
        %1717 = vset.pattern.permute.xlu0 2
        %1718 = vperm.xlu0 %1717, %v1287
        %v1719 = vpop.permute.xlu0 %1718
        %1721 = vset.pattern.permute.xlu0 2
        %1722 = vperm.xlu0 %1721, %v1289
        %v1723 = vpop.permute.xlu0 %1722
        %1725 = vset.pattern.permute.xlu0 2
        %1726 = vperm.xlu0 %1725, %v1291
        %v1727 = vpop.permute.xlu0 %1726
        %1729 = vset.pattern.permute.xlu0 2
        %1730 = vperm.xlu0 %1729, %v1293
        %v1731 = vpop.permute.xlu0 %1730
        %1733 = vset.pattern.permute.xlu0 2
        %1734 = vperm.xlu0 %1733, %v1295
        %v1735 = vpop.permute.xlu0 %1734
        %1737 = vset.pattern.permute.xlu0 2
        %1738 = vperm.xlu0 %1737, %v1297
        %v1739 = vpop.permute.xlu0 %1738
        %1741 = vset.pattern.permute.xlu0 2
        %1742 = vperm.xlu0 %1741, %v1299
        %v1743 = vpop.permute.xlu0 %1742
        %1745 = vset.pattern.permute.xlu0 2
        %1746 = vperm.xlu0 %1745, %v1301
        %v1747 = vpop.permute.xlu0 %1746
        %1749 = vset.pattern.permute.xlu0 2
        %1750 = vperm.xlu0 %1749, %v1303
        %v1751 = vpop.permute.xlu0 %1750
        %1753 = vset.pattern.permute.xlu0 2
        %1754 = vperm.xlu0 %1753, %v1305
        %v1755 = vpop.permute.xlu0 %1754
        %1757 = vset.pattern.permute.xlu0 2
        %1758 = vperm.xlu0 %1757, %v1307
        %v1759 = vpop.permute.xlu0 %1758
        %1761 = vset.pattern.permute.xlu0 2
        %1762 = vperm.xlu0 %1761, %v1309
        %v1763 = vpop.permute.xlu0 %1762
        %1765 = vset.pattern.permute.xlu0 2
        %1766 = vperm.xlu0 %1765, %v1311
        %v1767 = vpop.permute.xlu0 %1766
        %1769 = vset.pattern.permute.xlu0 2
        %1770 = vperm.xlu0 %1769, %v1313
        %v1771 = vpop.permute.xlu0 %1770
        %1773 = vset.pattern.permute.xlu0 2
        %1774 = vperm.xlu0 %1773, %v1315
        %v1775 = vpop.permute.xlu0 %1774
        %1777 = vset.pattern.permute.xlu0 2
        %1778 = vperm.xlu0 %1777, %v1317
        %v1779 = vpop.permute.xlu0 %1778
        %1781 = vset.pattern.permute.xlu0 2
        %1782 = vperm.xlu0 %1781, %v1319
        %v1783 = vpop.permute.xlu0 %1782
        %1785 = vset.pattern.permute.xlu0 2
        %1786 = vperm.xlu0 %1785, %v1321
        %v1787 = vpop.permute.xlu0 %1786
        %1789 = vset.pattern.permute.xlu0 2
        %1790 = vperm.xlu0 %1789, %v1323
        %v1791 = vpop.permute.xlu0 %1790
        %1793 = vset.pattern.permute.xlu0 2
        %1794 = vperm.xlu0 %1793, %v1325
        %v1795 = vpop.permute.xlu0 %1794
        %1797 = vset.pattern.permute.xlu0 2
        %1798 = vperm.xlu0 %1797, %v1327
        %v1799 = vpop.permute.xlu0 %1798
        %1801 = vset.pattern.permute.xlu0 2
        %1802 = vperm.xlu0 %1801, %v1329
        %v1803 = vpop.permute.xlu0 %1802
        %1805 = vset.pattern.permute.xlu0 2
        %1806 = vperm.xlu0 %1805, %v1331
        %v1807 = vpop.permute.xlu0 %1806
        %1809 = vset.pattern.permute.xlu0 2
        %1810 = vperm.xlu0 %1809, %v1333
        %v1811 = vpop.permute.xlu0 %1810
        %1813 = vset.pattern.permute.xlu0 2
        %1814 = vperm.xlu0 %1813, %v1335
        %v1815 = vpop.permute.xlu0 %1814
        %1817 = vset.pattern.permute.xlu0 2
        %1818 = vperm.xlu0 %1817, %v1337
        %v1819 = vpop.permute.xlu0 %1818
        %1821 = vset.pattern.permute.xlu0 2
        %1822 = vperm.xlu0 %1821, %v1339
        %v1823 = vpop.permute.xlu0 %1822
        %1825 = vset.pattern.permute.xlu0 2
        %1826 = vperm.xlu0 %1825, %v1341
        %v1827 = vpop.permute.xlu0 %1826
        %1829 = vset.pattern.permute.xlu0 2
        %1830 = vperm.xlu0 %1829, %v1343
        %v1831 = vpop.permute.xlu0 %1830
        %v1833 = vlaneseq
        %v1834 = vshrl.u32 %v1833, 7
        %v1835 = vsub.s32 2, %v1834
        %v1836 = vrot.slane %v1344, %v1835
        %v1837 = vmul.f32 %v1707, %v1836
        %v1838 = vmul.f32 %v1711, %v1836
        %v1839 = vmul.f32 %v1715, %v1836
        %v1840 = vmul.f32 %v1719, %v1836
        %v1841 = vmul.f32 %v1723, %v1836
        %v1842 = vmul.f32 %v1727, %v1836
        %v1843 = vmul.f32 %v1731, %v1836
        %v1844 = vmul.f32 %v1735, %v1836
        %v1845 = vmul.f32 %v1739, %v1836
        %v1846 = vmul.f32 %v1743, %v1836
        %v1847 = vmul.f32 %v1747, %v1836
        %v1848 = vmul.f32 %v1751, %v1836
        %v1849 = vmul.f32 %v1755, %v1836
        %v1850 = vmul.f32 %v1759, %v1836
        %v1851 = vmul.f32 %v1763, %v1836
        %v1852 = vmul.f32 %v1767, %v1836
        %v1853 = vmul.f32 %v1771, %v1836
        %v1854 = vmul.f32 %v1775, %v1836
        %v1855 = vmul.f32 %v1779, %v1836
        %v1856 = vmul.f32 %v1783, %v1836
        %v1857 = vmul.f32 %v1787, %v1836
        %v1858 = vmul.f32 %v1791, %v1836
        %v1859 = vmul.f32 %v1795, %v1836
        %v1860 = vmul.f32 %v1799, %v1836
        %v1861 = vmul.f32 %v1803, %v1836
        %v1862 = vmul.f32 %v1807, %v1836
        %v1863 = vmul.f32 %v1811, %v1836
        %v1864 = vmul.f32 %v1815, %v1836
        %v1865 = vmul.f32 %v1819, %v1836
        %v1866 = vmul.f32 %v1823, %v1836
        %v1867 = vmul.f32 %v1827, %v1836
        %v1868 = vmul.f32 %v1831, %v1836
        %1869 = vset.pattern.permute.xlu0 3
        %1870 = vperm.xlu0 %1869, %v1281
        %v1871 = vpop.permute.xlu0 %1870
        %1873 = vset.pattern.permute.xlu0 3
        %1874 = vperm.xlu0 %1873, %v1283
        %v1875 = vpop.permute.xlu0 %1874
        %1877 = vset.pattern.permute.xlu0 3
        %1878 = vperm.xlu0 %1877, %v1285
        %v1879 = vpop.permute.xlu0 %1878
        %1881 = vset.pattern.permute.xlu0 3
        %1882 = vperm.xlu0 %1881, %v1287
        %v1883 = vpop.permute.xlu0 %1882
        %1885 = vset.pattern.permute.xlu0 3
        %1886 = vperm.xlu0 %1885, %v1289
        %v1887 = vpop.permute.xlu0 %1886
        %1889 = vset.pattern.permute.xlu0 3
        %1890 = vperm.xlu0 %1889, %v1291
        %v1891 = vpop.permute.xlu0 %1890
        %1893 = vset.pattern.permute.xlu0 3
        %1894 = vperm.xlu0 %1893, %v1293
        %v1895 = vpop.permute.xlu0 %1894
        %1897 = vset.pattern.permute.xlu0 3
        %1898 = vperm.xlu0 %1897, %v1295
        %v1899 = vpop.permute.xlu0 %1898
        %1901 = vset.pattern.permute.xlu0 3
        %1902 = vperm.xlu0 %1901, %v1297
        %v1903 = vpop.permute.xlu0 %1902
        %1905 = vset.pattern.permute.xlu0 3
        %1906 = vperm.xlu0 %1905, %v1299
        %v1907 = vpop.permute.xlu0 %1906
        %1909 = vset.pattern.permute.xlu0 3
        %1910 = vperm.xlu0 %1909, %v1301
        %v1911 = vpop.permute.xlu0 %1910
        %1913 = vset.pattern.permute.xlu0 3
        %1914 = vperm.xlu0 %1913, %v1303
        %v1915 = vpop.permute.xlu0 %1914
        %1917 = vset.pattern.permute.xlu0 3
        %1918 = vperm.xlu0 %1917, %v1305
        %v1919 = vpop.permute.xlu0 %1918
        %1921 = vset.pattern.permute.xlu0 3
        %1922 = vperm.xlu0 %1921, %v1307
        %v1923 = vpop.permute.xlu0 %1922
        %1925 = vset.pattern.permute.xlu0 3
        %1926 = vperm.xlu0 %1925, %v1309
        %v1927 = vpop.permute.xlu0 %1926
        %1929 = vset.pattern.permute.xlu0 3
        %1930 = vperm.xlu0 %1929, %v1311
        %v1931 = vpop.permute.xlu0 %1930
        %1933 = vset.pattern.permute.xlu0 3
        %1934 = vperm.xlu0 %1933, %v1313
        %v1935 = vpop.permute.xlu0 %1934
        %1937 = vset.pattern.permute.xlu0 3
        %1938 = vperm.xlu0 %1937, %v1315
        %v1939 = vpop.permute.xlu0 %1938
        %1941 = vset.pattern.permute.xlu0 3
        %1942 = vperm.xlu0 %1941, %v1317
        %v1943 = vpop.permute.xlu0 %1942
        %1945 = vset.pattern.permute.xlu0 3
        %1946 = vperm.xlu0 %1945, %v1319
        %v1947 = vpop.permute.xlu0 %1946
        %1949 = vset.pattern.permute.xlu0 3
        %1950 = vperm.xlu0 %1949, %v1321
        %v1951 = vpop.permute.xlu0 %1950
        %1953 = vset.pattern.permute.xlu0 3
        %1954 = vperm.xlu0 %1953, %v1323
        %v1955 = vpop.permute.xlu0 %1954
        %1957 = vset.pattern.permute.xlu0 3
        %1958 = vperm.xlu0 %1957, %v1325
        %v1959 = vpop.permute.xlu0 %1958
        %1961 = vset.pattern.permute.xlu0 3
        %1962 = vperm.xlu0 %1961, %v1327
        %v1963 = vpop.permute.xlu0 %1962
        %1965 = vset.pattern.permute.xlu0 3
        %1966 = vperm.xlu0 %1965, %v1329
        %v1967 = vpop.permute.xlu0 %1966
        %1969 = vset.pattern.permute.xlu0 3
        %1970 = vperm.xlu0 %1969, %v1331
        %v1971 = vpop.permute.xlu0 %1970
        %1973 = vset.pattern.permute.xlu0 3
        %1974 = vperm.xlu0 %1973, %v1333
        %v1975 = vpop.permute.xlu0 %1974
        %1977 = vset.pattern.permute.xlu0 3
        %1978 = vperm.xlu0 %1977, %v1335
        %v1979 = vpop.permute.xlu0 %1978
        %1981 = vset.pattern.permute.xlu0 3
        %1982 = vperm.xlu0 %1981, %v1337
        %v1983 = vpop.permute.xlu0 %1982
        %1985 = vset.pattern.permute.xlu0 3
        %1986 = vperm.xlu0 %1985, %v1339
        %v1987 = vpop.permute.xlu0 %1986
        %1989 = vset.pattern.permute.xlu0 3
        %1990 = vperm.xlu0 %1989, %v1341
        %v1991 = vpop.permute.xlu0 %1990
        %1993 = vset.pattern.permute.xlu0 3
        %1994 = vperm.xlu0 %1993, %v1343
        %v1995 = vpop.permute.xlu0 %1994
        %v1997 = vlaneseq
        %v1998 = vshrl.u32 %v1997, 7
        %v1999 = vsub.s32 3, %v1998
        %v2000 = vrot.slane %v1344, %v1999
        %v2001 = vmul.f32 %v1871, %v2000
        %v2002 = vmul.f32 %v1875, %v2000
        %v2003 = vmul.f32 %v1879, %v2000
        %v2004 = vmul.f32 %v1883, %v2000
        %v2005 = vmul.f32 %v1887, %v2000
        %v2006 = vmul.f32 %v1891, %v2000
        %v2007 = vmul.f32 %v1895, %v2000
        %v2008 = vmul.f32 %v1899, %v2000
        %v2009 = vmul.f32 %v1903, %v2000
        %v2010 = vmul.f32 %v1907, %v2000
        %v2011 = vmul.f32 %v1911, %v2000
        %v2012 = vmul.f32 %v1915, %v2000
        %v2013 = vmul.f32 %v1919, %v2000
        %v2014 = vmul.f32 %v1923, %v2000
        %v2015 = vmul.f32 %v1927, %v2000
        %v2016 = vmul.f32 %v1931, %v2000
        %v2017 = vmul.f32 %v1935, %v2000
        %v2018 = vmul.f32 %v1939, %v2000
        %v2019 = vmul.f32 %v1943, %v2000
        %v2020 = vmul.f32 %v1947, %v2000
        %v2021 = vmul.f32 %v1951, %v2000
        %v2022 = vmul.f32 %v1955, %v2000
        %v2023 = vmul.f32 %v1959, %v2000
        %v2024 = vmul.f32 %v1963, %v2000
        %v2025 = vmul.f32 %v1967, %v2000
        %v2026 = vmul.f32 %v1971, %v2000
        %v2027 = vmul.f32 %v1975, %v2000
        %v2028 = vmul.f32 %v1979, %v2000
        %v2029 = vmul.f32 %v1983, %v2000
        %v2030 = vmul.f32 %v1987, %v2000
        %v2031 = vmul.f32 %v1991, %v2000
        %v2032 = vmul.f32 %v1995, %v2000
        %v2033 = vadd.f32 %v1509, %v1673
        %v2034 = vadd.f32 %v1510, %v1674
        %v2035 = vadd.f32 %v1511, %v1675
        %v2036 = vadd.f32 %v1512, %v1676
        %v2037 = vadd.f32 %v1513, %v1677
        %v2038 = vadd.f32 %v1514, %v1678
        %v2039 = vadd.f32 %v1515, %v1679
        %v2040 = vadd.f32 %v1516, %v1680
        %v2041 = vadd.f32 %v1517, %v1681
        %v2042 = vadd.f32 %v1518, %v1682
        %v2043 = vadd.f32 %v1519, %v1683
        %v2044 = vadd.f32 %v1520, %v1684
        %v2045 = vadd.f32 %v1521, %v1685
        %v2046 = vadd.f32 %v1522, %v1686
        %v2047 = vadd.f32 %v1523, %v1687
        %v2048 = vadd.f32 %v1524, %v1688
        %v2049 = vadd.f32 %v1525, %v1689
        %v2050 = vadd.f32 %v1526, %v1690
        %v2051 = vadd.f32 %v1527, %v1691
        %v2052 = vadd.f32 %v1528, %v1692
        %v2053 = vadd.f32 %v1529, %v1693
        %v2054 = vadd.f32 %v1530, %v1694
        %v2055 = vadd.f32 %v1531, %v1695
        %v2056 = vadd.f32 %v1532, %v1696
        %v2057 = vadd.f32 %v1533, %v1697
        %v2058 = vadd.f32 %v1534, %v1698
        %v2059 = vadd.f32 %v1535, %v1699
        %v2060 = vadd.f32 %v1536, %v1700
        %v2061 = vadd.f32 %v1537, %v1701
        %v2062 = vadd.f32 %v1538, %v1702
        %v2063 = vadd.f32 %v1539, %v1703
        %v2064 = vadd.f32 %v1540, %v1704
        %v2065 = vadd.f32 %v1837, %v2001
        %v2066 = vadd.f32 %v1838, %v2002
        %v2067 = vadd.f32 %v1839, %v2003
        %v2068 = vadd.f32 %v1840, %v2004
        %v2069 = vadd.f32 %v1841, %v2005
        %v2070 = vadd.f32 %v1842, %v2006
        %v2071 = vadd.f32 %v1843, %v2007
        %v2072 = vadd.f32 %v1844, %v2008
        %v2073 = vadd.f32 %v1845, %v2009
        %v2074 = vadd.f32 %v1846, %v2010
        %v2075 = vadd.f32 %v1847, %v2011
        %v2076 = vadd.f32 %v1848, %v2012
        %v2077 = vadd.f32 %v1849, %v2013
        %v2078 = vadd.f32 %v1850, %v2014
        %v2079 = vadd.f32 %v1851, %v2015
        %v2080 = vadd.f32 %v1852, %v2016
        %v2081 = vadd.f32 %v1853, %v2017
        %v2082 = vadd.f32 %v1854, %v2018
        %v2083 = vadd.f32 %v1855, %v2019
        %v2084 = vadd.f32 %v1856, %v2020
        %v2085 = vadd.f32 %v1857, %v2021
        %v2086 = vadd.f32 %v1858, %v2022
        %v2087 = vadd.f32 %v1859, %v2023
        %v2088 = vadd.f32 %v1860, %v2024
        %v2089 = vadd.f32 %v1861, %v2025
        %v2090 = vadd.f32 %v1862, %v2026
        %v2091 = vadd.f32 %v1863, %v2027
        %v2092 = vadd.f32 %v1864, %v2028
        %v2093 = vadd.f32 %v1865, %v2029
        %v2094 = vadd.f32 %v1866, %v2030
        %v2095 = vadd.f32 %v1867, %v2031
        %v2096 = vadd.f32 %v1868, %v2032
        %v2097 = vadd.f32 %v2033, %v2065
        %v2098 = vadd.f32 %v2034, %v2066
        %v2099 = vadd.f32 %v2035, %v2067
        %v2100 = vadd.f32 %v2036, %v2068
        %v2101 = vadd.f32 %v2037, %v2069
        %v2102 = vadd.f32 %v2038, %v2070
        %v2103 = vadd.f32 %v2039, %v2071
        %v2104 = vadd.f32 %v2040, %v2072
        %v2105 = vadd.f32 %v2041, %v2073
        %v2106 = vadd.f32 %v2042, %v2074
        %v2107 = vadd.f32 %v2043, %v2075
        %v2108 = vadd.f32 %v2044, %v2076
        %v2109 = vadd.f32 %v2045, %v2077
        %v2110 = vadd.f32 %v2046, %v2078
        %v2111 = vadd.f32 %v2047, %v2079
        %v2112 = vadd.f32 %v2048, %v2080
        %v2113 = vadd.f32 %v2049, %v2081
        %v2114 = vadd.f32 %v2050, %v2082
        %v2115 = vadd.f32 %v2051, %v2083
        %v2116 = vadd.f32 %v2052, %v2084
        %v2117 = vadd.f32 %v2053, %v2085
        %v2118 = vadd.f32 %v2054, %v2086
        %v2119 = vadd.f32 %v2055, %v2087
        %v2120 = vadd.f32 %v2056, %v2088
        %v2121 = vadd.f32 %v2057, %v2089
        %v2122 = vadd.f32 %v2058, %v2090
        %v2123 = vadd.f32 %v2059, %v2091
        %v2124 = vadd.f32 %v2060, %v2092
        %v2125 = vadd.f32 %v2061, %v2093
        %v2126 = vadd.f32 %v2062, %v2094
        %v2127 = vadd.f32 %v2063, %v2095
        %v2128 = vadd.f32 %v2064, %v2096
        %v2129 = vld [vmem:[%s2] sm:$0x1]
        %vm2130 = vcmp.ne.f32.partialorder %v2129, 0.0
        %v2131 = vsel %vm2130, 1, 0
        %v2132 = vlaneseq
        %v2133 = vshrl.u32 %v2132, 7
        %v2134 = vsub.s32 0, %v2133
        %v2135 = vrot.slane %v2131, %v2134
        %vm2136 = vcmp.eq.s32.totalorder %v2135, 1
        %v2137 = vsel %vm2136, 1.0, %v987
        %v2138 = vsel %vm2136, 1.0, %v990
        %v2139 = vsel %vm2136, 1.0, %v995
        %v2140 = vsel %vm2136, 1.0, %v998
        %v2141 = vsel %vm2136, 1.0, %v1003
        %v2142 = vsel %vm2136, 1.0, %v1006
        %v2143 = vsel %vm2136, 1.0, %v1011
        %v2144 = vsel %vm2136, 1.0, %v1014
        %v2145 = vsel %vm2136, 1.0, %v1019
        %v2146 = vsel %vm2136, 1.0, %v1022
        %v2147 = vsel %vm2136, 1.0, %v1027
        %v2148 = vsel %vm2136, 1.0, %v1030
        %v2149 = vsel %vm2136, 1.0, %v1035
        %v2150 = vsel %vm2136, 1.0, %v1038
        %v2151 = vsel %vm2136, 1.0, %v1043
        %v2152 = vsel %vm2136, 1.0, %v1046
        %v2153 = vsel %vm2136, 1.0, %v1051
        %v2154 = vsel %vm2136, 1.0, %v1054
        %v2155 = vsel %vm2136, 1.0, %v1059
        %v2156 = vsel %vm2136, 1.0, %v1062
        %v2157 = vsel %vm2136, 1.0, %v1067
        %v2158 = vsel %vm2136, 1.0, %v1070
        %v2159 = vsel %vm2136, 1.0, %v1075
        %v2160 = vsel %vm2136, 1.0, %v1078
        %v2161 = vsel %vm2136, 1.0, %v1083
        %v2162 = vsel %vm2136, 1.0, %v1086
        %v2163 = vsel %vm2136, 1.0, %v1091
        %v2164 = vsel %vm2136, 1.0, %v1094
        %v2165 = vsel %vm2136, 1.0, %v1099
        %v2166 = vsel %vm2136, 1.0, %v1102
        %v2167 = vsel %vm2136, 1.0, %v1107
        %v2168 = vsel %vm2136, 1.0, %v1110
        %v2169 = vmul.f32 %v2097, %v2137
        %v2170 = vmul.f32 %v2098, %v2138
        %v2171 = vmul.f32 %v2099, %v2139
        %v2172 = vmul.f32 %v2100, %v2140
        %v2173 = vmul.f32 %v2101, %v2141
        %v2174 = vmul.f32 %v2102, %v2142
        %v2175 = vmul.f32 %v2103, %v2143
        %v2176 = vmul.f32 %v2104, %v2144
        %v2177 = vmul.f32 %v2105, %v2145
        %v2178 = vmul.f32 %v2106, %v2146
        %v2179 = vmul.f32 %v2107, %v2147
        %v2180 = vmul.f32 %v2108, %v2148
        %v2181 = vmul.f32 %v2109, %v2149
        %v2182 = vmul.f32 %v2110, %v2150
        %v2183 = vmul.f32 %v2111, %v2151
        %v2184 = vmul.f32 %v2112, %v2152
        %v2185 = vmul.f32 %v2113, %v2153
        %v2186 = vmul.f32 %v2114, %v2154
        %v2187 = vmul.f32 %v2115, %v2155
        %v2188 = vmul.f32 %v2116, %v2156
        %v2189 = vmul.f32 %v2117, %v2157
        %v2190 = vmul.f32 %v2118, %v2158
        %v2191 = vmul.f32 %v2119, %v2159
        %v2192 = vmul.f32 %v2120, %v2160
        %v2193 = vmul.f32 %v2121, %v2161
        %v2194 = vmul.f32 %v2122, %v2162
        %v2195 = vmul.f32 %v2123, %v2163
        %v2196 = vmul.f32 %v2124, %v2164
        %v2197 = vmul.f32 %v2125, %v2165
        %v2198 = vmul.f32 %v2126, %v2166
        %v2199 = vmul.f32 %v2127, %v2167
        %v2200 = vmul.f32 %v2128, %v2168
        %v2201 = vpack.c.bf16 %v2170, %v2169
        %v2202 = vpack.c.bf16 %v2172, %v2171
        %v2203 = vpack.c.bf16 %v2174, %v2173
        %v2204 = vpack.c.bf16 %v2176, %v2175
        %v2205 = vpack.c.bf16 %v2178, %v2177
        %v2206 = vpack.c.bf16 %v2180, %v2179
        %v2207 = vpack.c.bf16 %v2182, %v2181
        %v2208 = vpack.c.bf16 %v2184, %v2183
        %v2209 = vpack.c.bf16 %v2186, %v2185
        %v2210 = vpack.c.bf16 %v2188, %v2187
        %v2211 = vpack.c.bf16 %v2190, %v2189
        %v2212 = vpack.c.bf16 %v2192, %v2191
        %v2213 = vpack.c.bf16 %v2194, %v2193
        %v2214 = vpack.c.bf16 %v2196, %v2195
        %v2215 = vpack.c.bf16 %v2198, %v2197
        %v2216 = vpack.c.bf16 %v2200, %v2199
        %v2217 = vld [vmem:[#allocation2] sm:$0xff]
        %v2218 = vld [vmem:[#allocation2 + $0x8] sm:$0xff]
        %v2219 = vld [vmem:[#allocation2 + $0x10] sm:$0xff]
        %v2220 = vld [vmem:[#allocation2 + $0x18] sm:$0xff]
        %v2221 = vld [vmem:[#allocation2 + $0x20] sm:$0xff]
        %v2222 = vld [vmem:[#allocation2 + $0x28] sm:$0xff]
        %v2223 = vld [vmem:[#allocation2 + $0x30] sm:$0xff]
        %v2224 = vld [vmem:[#allocation2 + $0x38] sm:$0xff]
        %2225 = vmatprep.subr.bf16.mxu0 0
        %2226 = vmatpush1.bf16.msra.mxu0 %v2208
        %2227 = vmatprep.subr.bf16.mxu0 0
        %2228 = vmatpush1.bf16.msra.mxu0 %v2207
        %2229 = vmatprep.subr.bf16.mxu0 0
        %2230 = vmatpush1.bf16.msra.mxu0 %v2206
        %2231 = vmatprep.subr.bf16.mxu0 0
        %2232 = vmatpush1.bf16.msra.mxu0 %v2205
        %2233 = vmatprep.subr.bf16.mxu0 0
        %2234 = vmatpush1.bf16.msra.mxu0 %v2204
        %2235 = vmatprep.subr.bf16.mxu0 0
        %2236 = vmatpush1.bf16.msra.mxu0 %v2203
        %2237 = vmatprep.subr.bf16.mxu0 0
        %2238 = vmatpush1.bf16.msra.mxu0 %v2202
        %2239 = vmatprep.subr.bf16.mxu0 0
        %2240 = vmatpush1.bf16.msra.mxu0 %v2201
        %2241 = vmatprep.subr.bf16.mxu0 0
        %2242 = vmatpush2.bf16.msra.mxu0 %v2216
        %2243 = vmatprep.subr.bf16.mxu0 0
        %2244 = vmatpush2.bf16.msra.mxu0 %v2215
        %2245 = vmatprep.subr.bf16.mxu0 0
        %2246 = vmatpush2.bf16.msra.mxu0 %v2214
        %2247 = vmatprep.subr.bf16.mxu0 0
        %2248 = vmatpush2.bf16.msra.mxu0 %v2213
        %2249 = vmatprep.subr.bf16.mxu0 0
        %2250 = vmatpush2.bf16.msra.mxu0 %v2212
        %2251 = vmatprep.subr.bf16.mxu0 0
        %2252 = vmatpush2.bf16.msra.mxu0 %v2211
        %2253 = vmatprep.subr.bf16.mxu0 0
        %2254 = vmatpush2.bf16.msra.mxu0 %v2210
        %2255 = vmatprep.subr.bf16.mxu0 0
        %2256 = vmatpush2.bf16.msra.mxu0 %v2209
        %2257 = vmatprep.mubr.bf16.mxu0 %v881
        %2258 = vmatmul.mubr.bf16.gmra.mxu0 %v880
        %v2259 = vpop.f32.mrf.mxu0
        %v2260 = vadd.f32 0.0, %v2259
        %v2261 = vpop.f32.mrf.mxu0
        %v2262 = vpop.f32.mrf.mxu0
        %v2263 = vadd.f32 0.0, %v2262
        %v2264 = vpop.f32.mrf.mxu0
        %2265 = vmatprep.mubr.bf16.mxu0 %v883
        %2266 = vmatmul.mubr.bf16.gmra.mxu0 %v882
        %v2267 = vpop.f32.mrf.mxu0
        %v2268 = vadd.f32 0.0, %v2267
        %v2269 = vpop.f32.mrf.mxu0
        %v2270 = vpop.f32.mrf.mxu0
        %v2271 = vadd.f32 0.0, %v2270
        %v2272 = vpop.f32.mrf.mxu0
        %2273 = vmatprep.mubr.bf16.mxu0 %v885
        %2274 = vmatmul.mubr.bf16.gmra.mxu0 %v884
        %v2275 = vpop.f32.mrf.mxu0
        %v2276 = vadd.f32 0.0, %v2275
        %v2277 = vpop.f32.mrf.mxu0
        %v2278 = vpop.f32.mrf.mxu0
        %v2279 = vadd.f32 0.0, %v2278
        %v2280 = vpop.f32.mrf.mxu0
        %2281 = vmatprep.mubr.bf16.mxu0 %v887
        %2282 = vmatmul.mubr.bf16.gmra.mxu0 %v886
        %v2283 = vpop.f32.mrf.mxu0
        %v2284 = vadd.f32 0.0, %v2283
        %v2285 = vpop.f32.mrf.mxu0
        %v2286 = vpop.f32.mrf.mxu0
        %v2287 = vadd.f32 0.0, %v2286
        %v2288 = vpop.f32.mrf.mxu0
        %2289 = vdwg.mxu0
        %v2290 = vadd.f32 %v2217, %v2260
        %v2291 = vadd.f32 %v2218, %v2263
        %v2292 = vadd.f32 %v2219, %v2268
        %v2293 = vadd.f32 %v2220, %v2271
        %v2294 = vadd.f32 %v2221, %v2276
        %v2295 = vadd.f32 %v2222, %v2279
        %v2296 = vadd.f32 %v2223, %v2284
        %v2297 = vadd.f32 %v2224, %v2287
        %2298 = vst [vmem:[#allocation2] sm:$0xff] %v2290
        %2299 = vst [vmem:[#allocation2 + $0x8] sm:$0xff] %v2291
        %2300 = vst [vmem:[#allocation2 + $0x10] sm:$0xff] %v2292
        %2301 = vst [vmem:[#allocation2 + $0x18] sm:$0xff] %v2293
        %2302 = vst [vmem:[#allocation2 + $0x20] sm:$0xff] %v2294
        %2303 = vst [vmem:[#allocation2 + $0x28] sm:$0xff] %v2295
        %2304 = vst [vmem:[#allocation2 + $0x30] sm:$0xff] %v2296
        %2305 = vst [vmem:[#allocation2 + $0x38] sm:$0xff] %v2297
        %p2306 = scmp.eq.s32.totalorder %s20, 1
        // Predicated region
        $region57: #{tpu_custom_call.1} parent=51 // pred_check
          %p2307 = pneg %p2306
        $region58: #{tpu_custom_call.1} parent=51 // pred_check_branch
          %2309 = sbr.rel (%p2307) target = $region60
        $region59: #{tpu_custom_call.1} parent=51 // pred_region
          %v2310 = vld [vmem:[#allocation2] sm:$0xff]
          %v2311 = vld [vmem:[#allocation2 + $0x8] sm:$0xff]
          %v2312 = vld [vmem:[#allocation2 + $0x10] sm:$0xff]
          %v2313 = vld [vmem:[#allocation2 + $0x18] sm:$0xff]
          %v2314 = vld [vmem:[#allocation2 + $0x20] sm:$0xff]
          %v2315 = vld [vmem:[#allocation2 + $0x28] sm:$0xff]
          %v2316 = vld [vmem:[#allocation2 + $0x30] sm:$0xff]
          %v2317 = vld [vmem:[#allocation2 + $0x38] sm:$0xff]
          %v2318 = vadd.f32 %v2310, 1e-16
          %v2319 = vadd.f32 %v2311, 1e-16
          %v2320 = vadd.f32 %v2312, 1e-16
          %v2321 = vadd.f32 %v2313, 1e-16
          %v2322 = vadd.f32 %v2314, 1e-16
          %v2323 = vadd.f32 %v2315, 1e-16
          %v2324 = vadd.f32 %v2316, 1e-16
          %v2325 = vadd.f32 %v2317, 1e-16
          %v2326 = vrcp.pop %v2318
          %v2327 = vrcp.pop %v2319
          %v2328 = vrcp.pop %v2320
          %v2329 = vrcp.pop %v2321
          %v2330 = vrcp.pop %v2322
          %v2331 = vrcp.pop %v2323
          %v2332 = vrcp.pop %v2324
          %v2333 = vrcp.pop %v2325
          %v2334 = vld [vmem:[%s1] sm:$0xf]
          %2336 = vset.pattern.permute.xlu0 0
          %2337 = vperm.xlu0 %2336, %v2326
          %v2338 = vpop.permute.xlu0 %2337
          %2341 = vset.pattern.permute.xlu0 0
          %2342 = vperm.xlu0 %2341, %v2327
          %v2343 = vpop.permute.xlu0 %2342
          %2346 = vset.pattern.permute.xlu0 0
          %2347 = vperm.xlu0 %2346, %v2328
          %v2348 = vpop.permute.xlu0 %2347
          %2351 = vset.pattern.permute.xlu0 0
          %2352 = vperm.xlu0 %2351, %v2329
          %v2353 = vpop.permute.xlu0 %2352
          %2356 = vset.pattern.permute.xlu0 0
          %2357 = vperm.xlu0 %2356, %v2330
          %v2358 = vpop.permute.xlu0 %2357
          %2361 = vset.pattern.permute.xlu0 0
          %2362 = vperm.xlu0 %2361, %v2331
          %v2363 = vpop.permute.xlu0 %2362
          %2366 = vset.pattern.permute.xlu0 0
          %2367 = vperm.xlu0 %2366, %v2332
          %v2368 = vpop.permute.xlu0 %2367
          %2371 = vset.pattern.permute.xlu0 0
          %2372 = vperm.xlu0 %2371, %v2333
          %v2373 = vpop.permute.xlu0 %2372
          %v2375 = vlaneseq
          %v2376 = vshrl.u32 %v2375, 7
          %v2377 = vsub.s32 0, %v2376
          %v2378 = vrot.slane %v2334, %v2377
          %v2379 = vmul.f32 %v2338, %v2378
          %v2380 = vmul.f32 %v2343, %v2378
          %v2381 = vmul.f32 %v2348, %v2378
          %v2382 = vmul.f32 %v2353, %v2378
          %v2383 = vmul.f32 %v2358, %v2378
          %v2384 = vmul.f32 %v2363, %v2378
          %v2385 = vmul.f32 %v2368, %v2378
          %v2386 = vmul.f32 %v2373, %v2378
          %2387 = vset.pattern.permute.xlu0 1
          %2388 = vperm.xlu0 %2387, %v2326
          %v2389 = vpop.permute.xlu0 %2388
          %2391 = vset.pattern.permute.xlu0 1
          %2392 = vperm.xlu0 %2391, %v2327
          %v2393 = vpop.permute.xlu0 %2392
          %2395 = vset.pattern.permute.xlu0 1
          %2396 = vperm.xlu0 %2395, %v2328
          %v2397 = vpop.permute.xlu0 %2396
          %2399 = vset.pattern.permute.xlu0 1
          %2400 = vperm.xlu0 %2399, %v2329
          %v2401 = vpop.permute.xlu0 %2400
          %2403 = vset.pattern.permute.xlu0 1
          %2404 = vperm.xlu0 %2403, %v2330
          %v2405 = vpop.permute.xlu0 %2404
          %2407 = vset.pattern.permute.xlu0 1
          %2408 = vperm.xlu0 %2407, %v2331
          %v2409 = vpop.permute.xlu0 %2408
          %2411 = vset.pattern.permute.xlu0 1
          %2412 = vperm.xlu0 %2411, %v2332
          %v2413 = vpop.permute.xlu0 %2412
          %2415 = vset.pattern.permute.xlu0 1
          %2416 = vperm.xlu0 %2415, %v2333
          %v2417 = vpop.permute.xlu0 %2416
          %v2419 = vlaneseq
          %v2420 = vshrl.u32 %v2419, 7
          %v2421 = vsub.s32 1, %v2420
          %v2422 = vrot.slane %v2334, %v2421
          %v2423 = vmul.f32 %v2389, %v2422
          %v2424 = vmul.f32 %v2393, %v2422
          %v2425 = vmul.f32 %v2397, %v2422
          %v2426 = vmul.f32 %v2401, %v2422
          %v2427 = vmul.f32 %v2405, %v2422
          %v2428 = vmul.f32 %v2409, %v2422
          %v2429 = vmul.f32 %v2413, %v2422
          %v2430 = vmul.f32 %v2417, %v2422
          %2431 = vset.pattern.permute.xlu0 2
          %2432 = vperm.xlu0 %2431, %v2326
          %v2433 = vpop.permute.xlu0 %2432
          %2435 = vset.pattern.permute.xlu0 2
          %2436 = vperm.xlu0 %2435, %v2327
          %v2437 = vpop.permute.xlu0 %2436
          %2439 = vset.pattern.permute.xlu0 2
          %2440 = vperm.xlu0 %2439, %v2328
          %v2441 = vpop.permute.xlu0 %2440
          %2443 = vset.pattern.permute.xlu0 2
          %2444 = vperm.xlu0 %2443, %v2329
          %v2445 = vpop.permute.xlu0 %2444
          %2447 = vset.pattern.permute.xlu0 2
          %2448 = vperm.xlu0 %2447, %v2330
          %v2449 = vpop.permute.xlu0 %2448
          %2451 = vset.pattern.permute.xlu0 2
          %2452 = vperm.xlu0 %2451, %v2331
          %v2453 = vpop.permute.xlu0 %2452
          %2455 = vset.pattern.permute.xlu0 2
          %2456 = vperm.xlu0 %2455, %v2332
          %v2457 = vpop.permute.xlu0 %2456
          %2459 = vset.pattern.permute.xlu0 2
          %2460 = vperm.xlu0 %2459, %v2333
          %v2461 = vpop.permute.xlu0 %2460
          %v2463 = vlaneseq
          %v2464 = vshrl.u32 %v2463, 7
          %v2465 = vsub.s32 2, %v2464
          %v2466 = vrot.slane %v2334, %v2465
          %v2467 = vmul.f32 %v2433, %v2466
          %v2468 = vmul.f32 %v2437, %v2466
          %v2469 = vmul.f32 %v2441, %v2466
          %v2470 = vmul.f32 %v2445, %v2466
          %v2471 = vmul.f32 %v2449, %v2466
          %v2472 = vmul.f32 %v2453, %v2466
          %v2473 = vmul.f32 %v2457, %v2466
          %v2474 = vmul.f32 %v2461, %v2466
          %2475 = vset.pattern.permute.xlu0 3
          %2476 = vperm.xlu0 %2475, %v2326
          %v2477 = vpop.permute.xlu0 %2476
          %2479 = vset.pattern.permute.xlu0 3
          %2480 = vperm.xlu0 %2479, %v2327
          %v2481 = vpop.permute.xlu0 %2480
          %2483 = vset.pattern.permute.xlu0 3
          %2484 = vperm.xlu0 %2483, %v2328
          %v2485 = vpop.permute.xlu0 %2484
          %2487 = vset.pattern.permute.xlu0 3
          %2488 = vperm.xlu0 %2487, %v2329
          %v2489 = vpop.permute.xlu0 %2488
          %2491 = vset.pattern.permute.xlu0 3
          %2492 = vperm.xlu0 %2491, %v2330
          %v2493 = vpop.permute.xlu0 %2492
          %2495 = vset.pattern.permute.xlu0 3
          %2496 = vperm.xlu0 %2495, %v2331
          %v2497 = vpop.permute.xlu0 %2496
          %2499 = vset.pattern.permute.xlu0 3
          %2500 = vperm.xlu0 %2499, %v2332
          %v2501 = vpop.permute.xlu0 %2500
          %2503 = vset.pattern.permute.xlu0 3
          %2504 = vperm.xlu0 %2503, %v2333
          %v2505 = vpop.permute.xlu0 %2504
          %v2507 = vlaneseq
          %v2508 = vshrl.u32 %v2507, 7
          %v2509 = vsub.s32 3, %v2508
          %v2510 = vrot.slane %v2334, %v2509
          %v2511 = vmul.f32 %v2477, %v2510
          %v2512 = vmul.f32 %v2481, %v2510
          %v2513 = vmul.f32 %v2485, %v2510
          %v2514 = vmul.f32 %v2489, %v2510
          %v2515 = vmul.f32 %v2493, %v2510
          %v2516 = vmul.f32 %v2497, %v2510
          %v2517 = vmul.f32 %v2501, %v2510
          %v2518 = vmul.f32 %v2505, %v2510
          %v2519 = vadd.f32 %v2379, %v2423
          %v2520 = vadd.f32 %v2380, %v2424
          %v2521 = vadd.f32 %v2381, %v2425
          %v2522 = vadd.f32 %v2382, %v2426
          %v2523 = vadd.f32 %v2383, %v2427
          %v2524 = vadd.f32 %v2384, %v2428
          %v2525 = vadd.f32 %v2385, %v2429
          %v2526 = vadd.f32 %v2386, %v2430
          %v2527 = vadd.f32 %v2467, %v2511
          %v2528 = vadd.f32 %v2468, %v2512
          %v2529 = vadd.f32 %v2469, %v2513
          %v2530 = vadd.f32 %v2470, %v2514
          %v2531 = vadd.f32 %v2471, %v2515
          %v2532 = vadd.f32 %v2472, %v2516
          %v2533 = vadd.f32 %v2473, %v2517
          %v2534 = vadd.f32 %v2474, %v2518
          %v2535 = vadd.f32 %v2519, %v2527
          %v2536 = vadd.f32 %v2520, %v2528
          %v2537 = vadd.f32 %v2521, %v2529
          %v2538 = vadd.f32 %v2522, %v2530
          %v2539 = vadd.f32 %v2523, %v2531
          %v2540 = vadd.f32 %v2524, %v2532
          %v2541 = vadd.f32 %v2525, %v2533
          %v2542 = vadd.f32 %v2526, %v2534
          %v2543 = vmul.f32 %v2310, %v2535
          %v2544 = vmul.f32 %v2311, %v2536
          %v2545 = vmul.f32 %v2312, %v2537
          %v2546 = vmul.f32 %v2313, %v2538
          %v2547 = vmul.f32 %v2314, %v2539
          %v2548 = vmul.f32 %v2315, %v2540
          %v2549 = vmul.f32 %v2316, %v2541
          %v2550 = vmul.f32 %v2317, %v2542
          %v2551 = vld [vmem:[%s4] sm:$0xff]
          %v2552 = vld [vmem:[%s4 + $0x8] sm:$0xff]
          %v2553 = vld [vmem:[%s4 + $0x10] sm:$0xff]
          %v2554 = vld [vmem:[%s4 + $0x18] sm:$0xff]
          %v2555 = vld [vmem:[%s4 + $0x20] sm:$0xff]
          %v2556 = vld [vmem:[%s4 + $0x28] sm:$0xff]
          %v2557 = vld [vmem:[%s4 + $0x30] sm:$0xff]
          %v2558 = vld [vmem:[%s4 + $0x38] sm:$0xff]
          %v2559 = vadd.f32 %v2543, %v2551
          %v2560 = vadd.f32 %v2544, %v2552
          %v2561 = vadd.f32 %v2545, %v2553
          %v2562 = vadd.f32 %v2546, %v2554
          %v2563 = vadd.f32 %v2547, %v2555
          %v2564 = vadd.f32 %v2548, %v2556
          %v2565 = vadd.f32 %v2549, %v2557
          %v2566 = vadd.f32 %v2550, %v2558
          %vm2567 = vcmp.gt.f32.partialorder %v2559, 0.0
          %vm2568 = vcmp.gt.f32.partialorder %v2560, 0.0
          %vm2569 = vcmp.gt.f32.partialorder %v2561, 0.0
          %vm2570 = vcmp.gt.f32.partialorder %v2562, 0.0
          %vm2571 = vcmp.gt.f32.partialorder %v2563, 0.0
          %vm2572 = vcmp.gt.f32.partialorder %v2564, 0.0
          %vm2573 = vcmp.gt.f32.partialorder %v2565, 0.0
          %vm2574 = vcmp.gt.f32.partialorder %v2566, 0.0
          %v2575 = vmin.f32 %v2559, 0.0
          %v2576 = vmin.f32 %v2560, 0.0
          %v2577 = vmin.f32 %v2561, 0.0
          %v2578 = vmin.f32 %v2562, 0.0
          %v2579 = vmin.f32 %v2563, 0.0
          %v2580 = vmin.f32 %v2564, 0.0
          %v2581 = vmin.f32 %v2565, 0.0
          %v2582 = vmin.f32 %v2566, 0.0
          %v2583 = vmul.f32 %v2575, 1.442695
          %v2584 = vpow.pop %v2583
          %v2585 = vmul.f32 %v2576, 1.442695
          %v2586 = vpow.pop %v2585
          %v2587 = vmul.f32 %v2577, 1.442695
          %v2588 = vpow.pop %v2587
          %v2589 = vmul.f32 %v2578, 1.442695
          %v2590 = vpow.pop %v2589
          %v2591 = vmul.f32 %v2579, 1.442695
          %v2592 = vpow.pop %v2591
          %v2593 = vmul.f32 %v2580, 1.442695
          %v2594 = vpow.pop %v2593
          %v2595 = vmul.f32 %v2581, 1.442695
          %v2596 = vpow.pop %v2595
          %v2597 = vmul.f32 %v2582, 1.442695
          %v2598 = vpow.pop %v2597
          %v2599 = vsub.f32 %v2584, 1.0
          %v2600 = vsub.f32 %v2586, 1.0
          %v2601 = vsub.f32 %v2588, 1.0
          %v2602 = vsub.f32 %v2590, 1.0
          %v2603 = vsub.f32 %v2592, 1.0
          %v2604 = vsub.f32 %v2594, 1.0
          %v2605 = vsub.f32 %v2596, 1.0
          %v2606 = vsub.f32 %v2598, 1.0
          %v2607 = vsel %vm2567, %v2559, %v2599
          %v2608 = vsel %vm2568, %v2560, %v2600
          %v2609 = vsel %vm2569, %v2561, %v2601
          %v2610 = vsel %vm2570, %v2562, %v2602
          %v2611 = vsel %vm2571, %v2563, %v2603
          %v2612 = vsel %vm2572, %v2564, %v2604
          %v2613 = vsel %vm2573, %v2565, %v2605
          %v2614 = vsel %vm2574, %v2566, %v2606
          %2615 = vst [vmem:[#allocation2] sm:$0xff] %v2607
          %2616 = vst [vmem:[#allocation2 + $0x8] sm:$0xff] %v2608
          %2617 = vst [vmem:[#allocation2 + $0x10] sm:$0xff] %v2609
          %2618 = vst [vmem:[#allocation2 + $0x18] sm:$0xff] %v2610
          %2619 = vst [vmem:[#allocation2 + $0x20] sm:$0xff] %v2611
          %2620 = vst [vmem:[#allocation2 + $0x28] sm:$0xff] %v2612
          %2621 = vst [vmem:[#allocation2 + $0x30] sm:$0xff] %v2613
          %2622 = vst [vmem:[#allocation2 + $0x38] sm:$0xff] %v2614
        $region60: #{tpu_custom_call.1} parent=51 // pred_fallthru
          _
        // Predicated region
        $region61: #{tpu_custom_call.1} parent=51 // pred_check
          %p2623 = pneg %p216
        $region62: #{tpu_custom_call.1} parent=51 // pred_check_branch
          %2625 = sbr.rel (%p2623) target = $region64
        $region63: #{tpu_custom_call.1} parent=51 // pred_region
          %s2627 = ssub.s32 1024, 1024
          %2628 = vsyncadd [#allocation3], %s2627
          %s2629 = sshll.u32 [#allocation2], 4
          %s2630 = int_to_ptr.vmem [resolvable:$true] %s2629
          %2635 = dma.vmem_to_hbm [thread:$0]  %s2630, 1024, %s8, [#allocation3], 128, 128, 8
        $region64: #{tpu_custom_call.1} parent=51 // pred_fallthru
          _
        // Predicated region
        $region65: #{tpu_custom_call.1} parent=51 // pred_check
          %p2636 = pneg %p216
        $region66: #{tpu_custom_call.1} parent=51 // pred_check_branch
          %2638 = sbr.rel (%p2636) target = $region68
        $region67: #{tpu_custom_call.1} parent=51 // pred_region
          %2639 = dma.done [#allocation3], 1024
        $region68: #{tpu_custom_call.1} parent=51 // pred_fallthru
          _
      $region52: #{tpu_custom_call.1} parent=5 // pred_fallthru
        _
      %p2640 = scmp.le.s32.totalorder 2, %s15
      // Predicated region
      $region69: #{tpu_custom_call.1} parent=5 // pred_check
        %p2641 = pneg %p2640
      $region70: #{tpu_custom_call.1} parent=5 // pred_check_branch
        %2643 = sbr.rel (%p2641) target = $region72
      $region71: #{tpu_custom_call.1} parent=5 // pred_region
        %s2644 = ssub.s32 %s15, 2
      $region72: #{tpu_custom_call.1} parent=5 // pred_fallthru
        _
    $region6: #{tpu_custom_call.1} parent=1 // loop_footer
      %s19 = sadd.s32 1, %s15
    $region7: #{tpu_custom_call.1} parent=1 // loop_footer_branch
      %14 = sbr.rel target = $region3
    $region8: #{tpu_custom_call.1} parent=1 // loop_exit
      _
    %2645 = vsyncpa [#allocation3], 1
    %s2646 = scalar_lea.sflag [#allocation3], 1
    %2647 = vsyncpa %s2646, 1

</llo_original>
